<compile_context>
chip_gen: v6e
topology: v6e:2x2x1
jax: 0.10.0
libtpu: 0.0.40
codegen_flags: <defaults>
</compile_context>

<pallas_src>
import functools

import jax
import jax.numpy as jnp
from jax.experimental import pallas as pl
from jax.experimental.pallas import tpu as pltpu


# ----------------------------------------------------------------------------
# Fused Pallas kernel: one grid step == one batch element (parallel axis).
# ----------------------------------------------------------------------------
def _mvstdm_kernel(x_ref, w_start_ref, b_start_ref,
                   wfg_ref, bfg_ref, ws_ref, bs_ref, wr_ref, br_ref,
                   w_end1_ref, b_end1_ref,
                   nv1_ref, nv2_ref, adj_ref, gcn_w_ref, gcn_b_ref,
                   o_ref, h_ref, *,
                   N, T, c_dil, out_dim, k, blocks, layers):
    f32 = jnp.float32
    R = N                            # rows per time step (this batch element)
    L = blocks * layers

    # ---- start 1x1 conv (channels-last matmul) -> VMEM scratch ----
    h_ref[...] = (jnp.dot(x_ref[...], w_start_ref[...],
                          preferred_element_type=f32) + b_start_ref[...])

    # ---- gated dilated temporal conv stack (fully unrolled; L is small) ----
    # h is kept right-aligned in h_ref: valid rows are the last T_cur*R rows,
    # so the residual connection is an exact in-place add (no shifting copy).
    T_cur = T
    g_lasts = []
    li = 0
    for _ in range(blocks):
        for layer in range(layers):
            d = 2 ** layer
            T_out = T_cur - d * (k - 1)
            rows_out = T_out * R
            base = (T - T_cur) * R               # first valid row of current h

            # fused (filter|gate) x (k taps) conv: ONE matmul per layer
            taps = [h_ref[base + j * d * R: base + j * d * R + rows_out, :]
                    for j in range(k)]
            lhs = jnp.concatenate(taps, axis=-1)            # (rows_out, k*c_res)
            fg = (jnp.dot(lhs, wfg_ref[li], preferred_element_type=f32)
                  + bfg_ref[li])                            # (rows_out, 2*c_dil)
            gate = jnp.tanh(fg[:, :c_dil]) * jax.nn.sigmoid(fg[:, c_dil:])

            # skip path: only the final time position reaches the readout;
            # keep it for the fused skip projection below.
            g_lasts.append(gate[rows_out - R:, :])          # (R, c_dil)

            # residual connection (not needed after the last layer)
            if li < L - 1:
                r = (jnp.dot(gate, wr_ref[li], preferred_element_type=f32)
                     + br_ref[li])                          # (rows_out, c_res)
                tail = h_ref[(T - T_out) * R: T * R, :]
                h_ref[(T - T_out) * R: T * R, :] = r + tail

            T_cur = T_out
            li += 1

    # ---- fused skip projection: sum_l g_l@Ws_l == concat(g_l) @ vstack(Ws_l) ----
    g_cat = jnp.concatenate(g_lasts, axis=-1)               # (R, L*c_dil)
    skip = jnp.dot(g_cat, ws_ref[...], preferred_element_type=f32) + bs_ref[...]

    # ---- end conv: relu -> 1x1 -> relu  (last-step readout) ----
    e = jnp.maximum(skip, 0.0)
    e = jnp.dot(e, w_end1_ref[...], preferred_element_type=f32) + b_end1_ref[...]
    e = jnp.maximum(e, 0.0)                                 # (R, c_end)

    # ---- adaptive adjacency: softmax(relu(E1 @ E2), axis=-1) ----
    # Recomputed per grid step (tiny) so the kernel stays correct under
    # "parallel" semantics (no cross-step scratch dependence).
    logits = jnp.dot(nv1_ref[...], nv2_ref[...], preferred_element_type=f32)
    a = jnp.maximum(logits, 0.0)
    a = a - jnp.max(a, axis=-1, keepdims=True)
    p = jnp.exp(a)
    a_adp = p * pl.reciprocal(jnp.sum(p, axis=-1, keepdims=True), approx=True)

    # ---- GCN: one packed-weight matmul + one fused 2-support aggregation ----
    xw = jnp.dot(e, gcn_w_ref[...], preferred_element_type=f32)   # (R, 2*out_dim)
    stacked = jnp.concatenate([xw[:, :out_dim], xw[:, out_dim:]], axis=0)  # (2N, out_dim)
    a_cat = jnp.concatenate([adj_ref[...], a_adp], axis=-1)               # (N, 2N)
    o_ref[...] = (jnp.dot(a_cat, stacked, preferred_element_type=f32)
                  + gcn_b_ref[...])                                        # (N, out_dim)


# ----------------------------------------------------------------------------
# Parameter init (deterministic, synthetic) + fused weight packing
# ----------------------------------------------------------------------------
def init_params(key, cfg, adj_matrix):
    def nxt():
        nonlocal key
        key, sub = jax.random.split(key)
        return sub

    def w(shape, scale=0.1):
        return scale * jax.random.normal(nxt(), shape, dtype=jnp.float32)

    c_in = cfg["in_dim"]
    c_res = cfg["residual_channels"]
    c_dil = cfg["dilation_channels"]
    c_skip = cfg["skip_channels"]
    c_end = cfg["end_channels"]
    k = cfg["kernel_size"]
    L = cfg["blocks"] * cfg["layers"]
    n = cfg["num_nodes"]
    emb = cfg["embed_dim"]
    out_dim = cfg["out_dim"]

    # per-layer weights (module semantics), then packed into fused layouts
    wf = w((L, k, c_res, c_dil))
    wg = w((L, k, c_res, c_dil))
    bf = w((L, 1, c_dil))
    bg = w((L, 1, c_dil))
    ws = w((L, c_dil, c_skip))
    bs = w((L, 1, c_skip))

    p = {}
    p["w_start"] = w((c_in, c_res))
    p["b_start"] = w((1, c_res))

    # fused filter|gate, tap-stacked conv weights: (L, k*c_res, 2*c_dil)
    p["wfg"] = jnp.concatenate([wf, wg], axis=-1).reshape(L, k * c_res, 2 * c_dil)
    p["bfg"] = jnp.concatenate([bf, bg], axis=-1)           # (L, 1, 2*c_dil)

    # fused skip projection: vstack per-layer Ws, sum per-layer biases
    p["ws"] = ws.reshape(L * c_dil, c_skip)                 # (L*c_dil, c_skip)
    p["bs"] = jnp.sum(bs, axis=0)                           # (1, c_skip)

    p["wr"] = w((L, c_dil, c_res))
    p["br"] = w((L, 1, c_res))

    p["w_end1"] = w((c_skip, c_end))
    p["b_end1"] = w((1, c_end))

    # GCN
    p["nodevec1"] = w((n, emb), scale=1.0)
    p["nodevec2"] = w((emb, n), scale=1.0)
    adj = adj_matrix.astype(jnp.float32) + jnp.eye(n, dtype=jnp.float32)
    p["adj_norm"] = adj / jnp.sum(adj, axis=-1, keepdims=True)
    gcn_w = w((2, c_end, out_dim))
    p["gcn_w"] = jnp.concatenate([gcn_w[0], gcn_w[1]], axis=-1)   # (c_end, 2*out_dim)
    p["gcn_b"] = w((1, out_dim))
    return p


# ----------------------------------------------------------------------------
# Forward (single pallas_call, grid over batch)
# ----------------------------------------------------------------------------
def mvstdm_forward(params, x_nchw, cfg, flag="Train"):
    B, c_in, N, T = x_nchw.shape
    out_dim = cfg["out_dim"]
    c_res = cfg["residual_channels"]
    TN = T * N

    # NCHW -> per-batch, time-major, channels-last rows: row = b*T*N + t*N + n
    # TODO(synk): at production sizes fold this transpose into the input
    #             BlockSpec/index_map (or accept channels-last input).
    x2 = jnp.transpose(x_nchw, (0, 3, 2, 1)).reshape(B * TN, c_in)
    x2 = x2.astype(jnp.float32)

    kernel = functools.partial(
        _mvstdm_kernel,
        N=N, T=T,
        c_dil=cfg["dilation_channels"], out_dim=out_dim,
        k=cfg["kernel_size"], blocks=cfg["blocks"], layers=cfg["layers"],
    )

    def bcast_spec(arr):
        nd = arr.ndim
        return pl.BlockSpec(arr.shape, lambda b: (0,) * nd,
                            memory_space=pltpu.MemorySpace.VMEM)

    weights = (
        params["w_start"], params["b_start"],
        params["wfg"], params["bfg"], params["ws"], params["bs"],
        params["wr"], params["br"],
        params["w_end1"], params["b_end1"],
        params["nodevec1"], params["nodevec2"], params["adj_norm"],
        params["gcn_w"], params["gcn_b"],
    )

    in_specs = [pl.BlockSpec((TN, c_in), lambda b: (b, 0),
                             memory_space=pltpu.MemorySpace.VMEM)]
    in_specs += [bcast_spec(wt) for wt in weights]

    out_flat = pl.pallas_call(
        kernel,
        out_shape=jax.ShapeDtypeStruct((B * N, out_dim), jnp.float32),
        grid_spec=pltpu.PrefetchScalarGridSpec(
            num_scalar_prefetch=0,
            grid=(B,),
            in_specs=in_specs,
            out_specs=pl.BlockSpec((N, out_dim), lambda b: (b, 0),
                                   memory_space=pltpu.MemorySpace.VMEM),
            scratch_shapes=[pltpu.VMEM((TN, c_res), jnp.float32)],
        ),
        compiler_params=pltpu.CompilerParams(
            dimension_semantics=("parallel",),        # megacore sharding on v7x
            vmem_limit_bytes=32 * 1024 * 1024,
        ),
    )(x2, *weights)

    # TODO(synk): dropout controlled by `flag` omitted (dropout_rate == 0.0 here).
    return out_flat.reshape(B, N, out_dim)


# ----------------------------------------------------------------------------
if __name__ == "__main__":
    cfg = dict(
        in_dim=2, num_nodes=8, seq_length_x=8, seq_length_y=4,
        dropout_rate=0.0, out_dim=4,
        residual_channels=16, dilation_channels=16,
        skip_channels=32, end_channels=32,
        blocks=2, layers=2, kernel_size=2,
        batch_size=2, embed_dim=4,
    )

    # deterministic adjacency + params
    key_adj = jax.random.PRNGKey(7)
    adj_rand = jax.random.uniform(key_adj, (cfg["num_nodes"], cfg["num_nodes"]),
                                  dtype=jnp.float32)
    adj_matrix = 0.5 * (adj_rand + adj_rand.T)

    params = init_params(jax.random.PRNGKey(42), cfg, adj_matrix)

    # deterministic input, NCHW: (batch, in_dim, num_nodes, seq_length_x)
    x = jax.random.normal(
        jax.random.PRNGKey(0),
        (cfg["batch_size"], cfg["in_dim"], cfg["num_nodes"], cfg["seq_length_x"]),
        dtype=jnp.float32,
    )

    fwd = jax.jit(lambda p, xx: mvstdm_forward(p, xx, cfg))
    out = fwd(params, x)
    out = jax.block_until_ready(out)

    assert out.shape == (cfg["batch_size"], cfg["num_nodes"], cfg["out_dim"])
    assert bool(jnp.all(jnp.isfinite(out)))
    print("KERNEL_OK")
</pallas_src>

<mosaic_0001>
module attributes {stable_mosaic.version = 11 : i64} {
  func.func @_mvstdm_kernel(%arg0: i32, %arg1: memref<64x2xf32, #tpu.memory_space<vmem>>, %arg2: memref<2x16xf32, #tpu.memory_space<vmem>>, %arg3: memref<1x16xf32, #tpu.memory_space<vmem>>, %arg4: memref<4x32x32xf32, #tpu.memory_space<vmem>>, %arg5: memref<4x1x32xf32, #tpu.memory_space<vmem>>, %arg6: memref<64x32xf32, #tpu.memory_space<vmem>>, %arg7: memref<1x32xf32, #tpu.memory_space<vmem>>, %arg8: memref<4x16x16xf32, #tpu.memory_space<vmem>>, %arg9: memref<4x1x16xf32, #tpu.memory_space<vmem>>, %arg10: memref<32x32xf32, #tpu.memory_space<vmem>>, %arg11: memref<1x32xf32, #tpu.memory_space<vmem>>, %arg12: memref<8x4xf32, #tpu.memory_space<vmem>>, %arg13: memref<4x8xf32, #tpu.memory_space<vmem>>, %arg14: memref<8x8xf32, #tpu.memory_space<vmem>>, %arg15: memref<32x8xf32, #tpu.memory_space<vmem>>, %arg16: memref<1x4xf32, #tpu.memory_space<vmem>>, %arg17: memref<8x4xf32, #tpu.memory_space<vmem>>, %arg18: memref<64x16xf32, #tpu.memory_space<vmem>>) attributes {dimension_semantics = [#tpu.dimension_semantics<parallel>], iteration_bounds = array<i64: 2>, scalar_prefetch = 0 : i64, scratch_operands = 1 : i64, tpu.core_type = #tpu.core_type<tc>, window_params = [{transform_indices = @transform_0, window_bounds = array<i64: 64, 2>}, {pipeline_mode = #tpu.pipeline_mode<synchronous>, transform_indices = @transform_1, window_bounds = array<i64: 2, 16>}, {pipeline_mode = #tpu.pipeline_mode<synchronous>, transform_indices = @transform_2, window_bounds = array<i64: 1, 16>}, {pipeline_mode = #tpu.pipeline_mode<synchronous>, transform_indices = @transform_3, window_bounds = array<i64: 4, 32, 32>}, {pipeline_mode = #tpu.pipeline_mode<synchronous>, transform_indices = @transform_4, window_bounds = array<i64: 4, 1, 32>}, {pipeline_mode = #tpu.pipeline_mode<synchronous>, transform_indices = @transform_5, window_bounds = array<i64: 64, 32>}, {pipeline_mode = #tpu.pipeline_mode<synchronous>, transform_indices = @transform_6, window_bounds = array<i64: 1, 32>}, {pipeline_mode = #tpu.pipeline_mode<synchronous>, transform_indices = @transform_7, window_bounds = array<i64: 4, 16, 16>}, {pipeline_mode = #tpu.pipeline_mode<synchronous>, transform_indices = @transform_8, window_bounds = array<i64: 4, 1, 16>}, {pipeline_mode = #tpu.pipeline_mode<synchronous>, transform_indices = @transform_9, window_bounds = array<i64: 32, 32>}, {pipeline_mode = #tpu.pipeline_mode<synchronous>, transform_indices = @transform_10, window_bounds = array<i64: 1, 32>}, {pipeline_mode = #tpu.pipeline_mode<synchronous>, transform_indices = @transform_11, window_bounds = array<i64: 8, 4>}, {pipeline_mode = #tpu.pipeline_mode<synchronous>, transform_indices = @transform_12, window_bounds = array<i64: 4, 8>}, {pipeline_mode = #tpu.pipeline_mode<synchronous>, transform_indices = @transform_13, window_bounds = array<i64: 8, 8>}, {pipeline_mode = #tpu.pipeline_mode<synchronous>, transform_indices = @transform_14, window_bounds = array<i64: 32, 8>}, {pipeline_mode = #tpu.pipeline_mode<synchronous>, transform_indices = @transform_15, window_bounds = array<i64: 1, 4>}, {transform_indices = @transform_16, window_bounds = array<i64: 8, 4>}]} {
    %c0 = arith.constant 0 : index
    %c0_0 = arith.constant 0 : index
    %0 = vector.load %arg1[%c0, %c0_0] : memref<64x2xf32, #tpu.memory_space<vmem>>, vector<64x2xf32>
    %c0_1 = arith.constant 0 : index
    %c0_2 = arith.constant 0 : index
    %1 = vector.load %arg2[%c0_1, %c0_2] : memref<2x16xf32, #tpu.memory_space<vmem>>, vector<2x16xf32>
    %cst = arith.constant dense<0.000000e+00> : vector<64x16xf32>
    %2 = tpu.matmul %0, %1, %cst {dimension_numbers = #tpu.dot_dimension_numbers<[1], [0], [0], [1], [0, 0, 1, 1], [], []>} : vector<64x2xf32>, vector<2x16xf32>, vector<64x16xf32> -> vector<64x16xf32>
    %c0_3 = arith.constant 0 : index
    %c0_4 = arith.constant 0 : index
    %3 = vector.load %arg3[%c0_3, %c0_4] : memref<1x16xf32, #tpu.memory_space<vmem>>, vector<1x16xf32>
    %4 = vector.broadcast %3 : vector<1x16xf32> to vector<64x16xf32>
    %5 = arith.addf %2, %4 : vector<64x16xf32>
    %c0_5 = arith.constant 0 : index
    %c0_6 = arith.constant 0 : index
    %6 = vector.load %arg18[%c0_5, %c0_6] : memref<64x16xf32, #tpu.memory_space<vmem>>, vector<64x16xf32>
    tpu.vector_store %arg18[%c0_5, %c0_6], %5 {strides = array<i32>} : memref<64x16xf32, #tpu.memory_space<vmem>>, vector<64x16xf32>,
    %c0_7 = arith.constant 0 : index
    %c0_8 = arith.constant 0 : index
    %7 = vector.load %arg18[%c0_7, %c0_8] : memref<64x16xf32, #tpu.memory_space<vmem>>, vector<56x16xf32>
    %c8 = arith.constant 8 : index
    %c0_9 = arith.constant 0 : index
    %8 = vector.load %arg18[%c8, %c0_9] : memref<64x16xf32, #tpu.memory_space<vmem>>, vector<56x16xf32>
    %9 = tpu.concatenate %7, %8 in 1 : vector<56x16xf32>, vector<56x16xf32> -> vector<56x32xf32>
    %c0_10 = arith.constant 0 : index
    %c0_11 = arith.constant 0 : index
    %c0_12 = arith.constant 0 : index
    %10 = vector.load %arg4[%c0_10, %c0_11, %c0_12] : memref<4x32x32xf32, #tpu.memory_space<vmem>>, vector<1x32x32xf32>
    %11 = vector.shape_cast %10 : vector<1x32x32xf32> to vector<32x32xf32>
    %cst_13 = arith.constant dense<0.000000e+00> : vector<56x32xf32>
    %12 = tpu.matmul %9, %11, %cst_13 {dimension_numbers = #tpu.dot_dimension_numbers<[1], [0], [0], [1], [0, 0, 1, 1], [], []>} : vector<56x32xf32>, vector<32x32xf32>, vector<56x32xf32> -> vector<56x32xf32>
    %c0_14 = arith.constant 0 : index
    %c0_15 = arith.constant 0 : index
    %c0_16 = arith.constant 0 : index
    %13 = vector.load %arg5[%c0_14, %c0_15, %c0_16] : memref<4x1x32xf32, #tpu.memory_space<vmem>>, vector<1x1x32xf32>
    %14 = vector.shape_cast %13 : vector<1x1x32xf32> to vector<1x32xf32>
    %15 = vector.broadcast %14 : vector<1x32xf32> to vector<56x32xf32>
    %16 = arith.addf %12, %15 : vector<56x32xf32>
    %17 = vector.extract_strided_slice %16 {offsets = [0, 0], sizes = [56, 16], strides = [1, 1]} : vector<56x32xf32> to vector<56x16xf32>
    %18 = math.tanh %17 : vector<56x16xf32>
    %19 = vector.extract_strided_slice %16 {offsets = [0, 16], sizes = [56, 16], strides = [1, 1]} : vector<56x32xf32> to vector<56x16xf32>
    %20 = arith.negf %19 : vector<56x16xf32>
    %21 = math.exp %20 : vector<56x16xf32>
    %cst_17 = arith.constant 1.000000e+00 : f32
    %22 = vector.broadcast %cst_17 : f32 to vector<56x16xf32>
    %23 = arith.addf %22, %21 : vector<56x16xf32>
    %24 = arith.divf %22, %23 : vector<56x16xf32>
    %25 = arith.mulf %18, %24 : vector<56x16xf32>
    %26 = vector.extract_strided_slice %25 {offsets = [48, 0], sizes = [8, 16], strides = [1, 1]} : vector<56x16xf32> to vector<8x16xf32>
    %c0_18 = arith.constant 0 : index
    %c0_19 = arith.constant 0 : index
    %c0_20 = arith.constant 0 : index
    %27 = vector.load %arg8[%c0_18, %c0_19, %c0_20] : memref<4x16x16xf32, #tpu.memory_space<vmem>>, vector<1x16x16xf32>
    %28 = vector.shape_cast %27 : vector<1x16x16xf32> to vector<16x16xf32>
    %cst_21 = arith.constant dense<0.000000e+00> : vector<56x16xf32>
    %29 = tpu.matmul %25, %28, %cst_21 {dimension_numbers = #tpu.dot_dimension_numbers<[1], [0], [0], [1], [0, 0, 1, 1], [], []>} : vector<56x16xf32>, vector<16x16xf32>, vector<56x16xf32> -> vector<56x16xf32>
    %c0_22 = arith.constant 0 : index
    %c0_23 = arith.constant 0 : index
    %c0_24 = arith.constant 0 : index
    %30 = vector.load %arg9[%c0_22, %c0_23, %c0_24] : memref<4x1x16xf32, #tpu.memory_space<vmem>>, vector<1x1x16xf32>
    %31 = vector.shape_cast %30 : vector<1x1x16xf32> to vector<1x16xf32>
    %32 = vector.broadcast %31 : vector<1x16xf32> to vector<56x16xf32>
    %33 = arith.addf %29, %32 : vector<56x16xf32>
    %c8_25 = arith.constant 8 : index
    %c0_26 = arith.constant 0 : index
    %34 = vector.load %arg18[%c8_25, %c0_26] : memref<64x16xf32, #tpu.memory_space<vmem>>, vector<56x16xf32>
    %35 = arith.addf %33, %34 : vector<56x16xf32>
    %c8_27 = arith.constant 8 : index
    %c0_28 = arith.constant 0 : index
    %36 = vector.load %arg18[%c8_27, %c0_28] : memref<64x16xf32, #tpu.memory_space<vmem>>, vector<56x16xf32>
    tpu.vector_store %arg18[%c8_27, %c0_28], %35 {strides = array<i32>} : memref<64x16xf32, #tpu.memory_space<vmem>>, vector<56x16xf32>,
    %c8_29 = arith.constant 8 : index
    %c0_30 = arith.constant 0 : index
    %37 = vector.load %arg18[%c8_29, %c0_30] : memref<64x16xf32, #tpu.memory_space<vmem>>, vector<40x16xf32>
    %c24 = arith.constant 24 : index
    %c0_31 = arith.constant 0 : index
    %38 = vector.load %arg18[%c24, %c0_31] : memref<64x16xf32, #tpu.memory_space<vmem>>, vector<40x16xf32>
    %39 = tpu.concatenate %37, %38 in 1 : vector<40x16xf32>, vector<40x16xf32> -> vector<40x32xf32>
    %c1 = arith.constant 1 : index
    %c0_32 = arith.constant 0 : index
    %c0_33 = arith.constant 0 : index
    %40 = vector.load %arg4[%c1, %c0_32, %c0_33] : memref<4x32x32xf32, #tpu.memory_space<vmem>>, vector<1x32x32xf32>
    %41 = vector.shape_cast %40 : vector<1x32x32xf32> to vector<32x32xf32>
    %cst_34 = arith.constant dense<0.000000e+00> : vector<40x32xf32>
    %42 = tpu.matmul %39, %41, %cst_34 {dimension_numbers = #tpu.dot_dimension_numbers<[1], [0], [0], [1], [0, 0, 1, 1], [], []>} : vector<40x32xf32>, vector<32x32xf32>, vector<40x32xf32> -> vector<40x32xf32>
    %c1_35 = arith.constant 1 : index
    %c0_36 = arith.constant 0 : index
    %c0_37 = arith.constant 0 : index
    %43 = vector.load %arg5[%c1_35, %c0_36, %c0_37] : memref<4x1x32xf32, #tpu.memory_space<vmem>>, vector<1x1x32xf32>
    %44 = vector.shape_cast %43 : vector<1x1x32xf32> to vector<1x32xf32>
    %45 = vector.broadcast %44 : vector<1x32xf32> to vector<40x32xf32>
    %46 = arith.addf %42, %45 : vector<40x32xf32>
    %47 = vector.extract_strided_slice %46 {offsets = [0, 0], sizes = [40, 16], strides = [1, 1]} : vector<40x32xf32> to vector<40x16xf32>
    %48 = math.tanh %47 : vector<40x16xf32>
    %49 = vector.extract_strided_slice %46 {offsets = [0, 16], sizes = [40, 16], strides = [1, 1]} : vector<40x32xf32> to vector<40x16xf32>
    %50 = arith.negf %49 : vector<40x16xf32>
    %51 = math.exp %50 : vector<40x16xf32>
    %cst_38 = arith.constant 1.000000e+00 : f32
    %52 = vector.broadcast %cst_38 : f32 to vector<40x16xf32>
    %53 = arith.addf %52, %51 : vector<40x16xf32>
    %54 = arith.divf %52, %53 : vector<40x16xf32>
    %55 = arith.mulf %48, %54 : vector<40x16xf32>
    %56 = vector.extract_strided_slice %55 {offsets = [32, 0], sizes = [8, 16], strides = [1, 1]} : vector<40x16xf32> to vector<8x16xf32>
    %c1_39 = arith.constant 1 : index
    %c0_40 = arith.constant 0 : index
    %c0_41 = arith.constant 0 : index
    %57 = vector.load %arg8[%c1_39, %c0_40, %c0_41] : memref<4x16x16xf32, #tpu.memory_space<vmem>>, vector<1x16x16xf32>
    %58 = vector.shape_cast %57 : vector<1x16x16xf32> to vector<16x16xf32>
    %cst_42 = arith.constant dense<0.000000e+00> : vector<40x16xf32>
    %59 = tpu.matmul %55, %58, %cst_42 {dimension_numbers = #tpu.dot_dimension_numbers<[1], [0], [0], [1], [0, 0, 1, 1], [], []>} : vector<40x16xf32>, vector<16x16xf32>, vector<40x16xf32> -> vector<40x16xf32>
    %c1_43 = arith.constant 1 : index
    %c0_44 = arith.constant 0 : index
    %c0_45 = arith.constant 0 : index
    %60 = vector.load %arg9[%c1_43, %c0_44, %c0_45] : memref<4x1x16xf32, #tpu.memory_space<vmem>>, vector<1x1x16xf32>
    %61 = vector.shape_cast %60 : vector<1x1x16xf32> to vector<1x16xf32>
    %62 = vector.broadcast %61 : vector<1x16xf32> to vector<40x16xf32>
    %63 = arith.addf %59, %62 : vector<40x16xf32>
    %c24_46 = arith.constant 24 : index
    %c0_47 = arith.constant 0 : index
    %64 = vector.load %arg18[%c24_46, %c0_47] : memref<64x16xf32, #tpu.memory_space<vmem>>, vector<40x16xf32>
    %65 = arith.addf %63, %64 : vector<40x16xf32>
    %c24_48 = arith.constant 24 : index
    %c0_49 = arith.constant 0 : index
    %66 = vector.load %arg18[%c24_48, %c0_49] : memref<64x16xf32, #tpu.memory_space<vmem>>, vector<40x16xf32>
    tpu.vector_store %arg18[%c24_48, %c0_49], %65 {strides = array<i32>} : memref<64x16xf32, #tpu.memory_space<vmem>>, vector<40x16xf32>,
    %c24_50 = arith.constant 24 : index
    %c0_51 = arith.constant 0 : index
    %67 = vector.load %arg18[%c24_50, %c0_51] : memref<64x16xf32, #tpu.memory_space<vmem>>, vector<32x16xf32>
    %c32 = arith.constant 32 : index
    %c0_52 = arith.constant 0 : index
    %68 = vector.load %arg18[%c32, %c0_52] : memref<64x16xf32, #tpu.memory_space<vmem>>, vector<32x16xf32>
    %69 = tpu.concatenate %67, %68 in 1 : vector<32x16xf32>, vector<32x16xf32> -> vector<32x32xf32>
    %c2 = arith.constant 2 : index
    %c0_53 = arith.constant 0 : index
    %c0_54 = arith.constant 0 : index
    %70 = vector.load %arg4[%c2, %c0_53, %c0_54] : memref<4x32x32xf32, #tpu.memory_space<vmem>>, vector<1x32x32xf32>
    %71 = vector.shape_cast %70 : vector<1x32x32xf32> to vector<32x32xf32>
    %cst_55 = arith.constant dense<0.000000e+00> : vector<32x32xf32>
    %72 = tpu.matmul %69, %71, %cst_55 {dimension_numbers = #tpu.dot_dimension_numbers<[1], [0], [0], [1], [0, 0, 1, 1], [], []>} : vector<32x32xf32>, vector<32x32xf32>, vector<32x32xf32> -> vector<32x32xf32>
    %c2_56 = arith.constant 2 : index
    %c0_57 = arith.constant 0 : index
    %c0_58 = arith.constant 0 : index
    %73 = vector.load %arg5[%c2_56, %c0_57, %c0_58] : memref<4x1x32xf32, #tpu.memory_space<vmem>>, vector<1x1x32xf32>
    %74 = vector.shape_cast %73 : vector<1x1x32xf32> to vector<1x32xf32>
    %75 = vector.broadcast %74 : vector<1x32xf32> to vector<32x32xf32>
    %76 = arith.addf %72, %75 : vector<32x32xf32>
    %77 = vector.extract_strided_slice %76 {offsets = [0, 0], sizes = [32, 16], strides = [1, 1]} : vector<32x32xf32> to vector<32x16xf32>
    %78 = math.tanh %77 : vector<32x16xf32>
    %79 = vector.extract_strided_slice %76 {offsets = [0, 16], sizes = [32, 16], strides = [1, 1]} : vector<32x32xf32> to vector<32x16xf32>
    %80 = arith.negf %79 : vector<32x16xf32>
    %81 = math.exp %80 : vector<32x16xf32>
    %cst_59 = arith.constant 1.000000e+00 : f32
    %82 = vector.broadcast %cst_59 : f32 to vector<32x16xf32>
    %83 = arith.addf %82, %81 : vector<32x16xf32>
    %84 = arith.divf %82, %83 : vector<32x16xf32>
    %85 = arith.mulf %78, %84 : vector<32x16xf32>
    %86 = vector.extract_strided_slice %85 {offsets = [24, 0], sizes = [8, 16], strides = [1, 1]} : vector<32x16xf32> to vector<8x16xf32>
    %c2_60 = arith.constant 2 : index
    %c0_61 = arith.constant 0 : index
    %c0_62 = arith.constant 0 : index
    %87 = vector.load %arg8[%c2_60, %c0_61, %c0_62] : memref<4x16x16xf32, #tpu.memory_space<vmem>>, vector<1x16x16xf32>
    %88 = vector.shape_cast %87 : vector<1x16x16xf32> to vector<16x16xf32>
    %cst_63 = arith.constant dense<0.000000e+00> : vector<32x16xf32>
    %89 = tpu.matmul %85, %88, %cst_63 {dimension_numbers = #tpu.dot_dimension_numbers<[1], [0], [0], [1], [0, 0, 1, 1], [], []>} : vector<32x16xf32>, vector<16x16xf32>, vector<32x16xf32> -> vector<32x16xf32>
    %c2_64 = arith.constant 2 : index
    %c0_65 = arith.constant 0 : index
    %c0_66 = arith.constant 0 : index
    %90 = vector.load %arg9[%c2_64, %c0_65, %c0_66] : memref<4x1x16xf32, #tpu.memory_space<vmem>>, vector<1x1x16xf32>
    %91 = vector.shape_cast %90 : vector<1x1x16xf32> to vector<1x16xf32>
    %92 = vector.broadcast %91 : vector<1x16xf32> to vector<32x16xf32>
    %93 = arith.addf %89, %92 : vector<32x16xf32>
    %c32_67 = arith.constant 32 : index
    %c0_68 = arith.constant 0 : index
    %94 = vector.load %arg18[%c32_67, %c0_68] : memref<64x16xf32, #tpu.memory_space<vmem>>, vector<32x16xf32>
    %95 = arith.addf %93, %94 : vector<32x16xf32>
    %c32_69 = arith.constant 32 : index
    %c0_70 = arith.constant 0 : index
    %96 = vector.load %arg18[%c32_69, %c0_70] : memref<64x16xf32, #tpu.memory_space<vmem>>, vector<32x16xf32>
    tpu.vector_store %arg18[%c32_69, %c0_70], %95 {strides = array<i32>} : memref<64x16xf32, #tpu.memory_space<vmem>>, vector<32x16xf32>,
    %c32_71 = arith.constant 32 : index
    %c0_72 = arith.constant 0 : index
    %97 = vector.load %arg18[%c32_71, %c0_72] : memref<64x16xf32, #tpu.memory_space<vmem>>, vector<16x16xf32>
    %c48 = arith.constant 48 : index
    %c0_73 = arith.constant 0 : index
    %98 = vector.load %arg18[%c48, %c0_73] : memref<64x16xf32, #tpu.memory_space<vmem>>, vector<16x16xf32>
    %99 = tpu.concatenate %97, %98 in 1 : vector<16x16xf32>, vector<16x16xf32> -> vector<16x32xf32>
    %c3 = arith.constant 3 : index
    %c0_74 = arith.constant 0 : index
    %c0_75 = arith.constant 0 : index
    %100 = vector.load %arg4[%c3, %c0_74, %c0_75] : memref<4x32x32xf32, #tpu.memory_space<vmem>>, vector<1x32x32xf32>
    %101 = vector.shape_cast %100 : vector<1x32x32xf32> to vector<32x32xf32>
    %cst_76 = arith.constant dense<0.000000e+00> : vector<16x32xf32>
    %102 = tpu.matmul %99, %101, %cst_76 {dimension_numbers = #tpu.dot_dimension_numbers<[1], [0], [0], [1], [0, 0, 1, 1], [], []>} : vector<16x32xf32>, vector<32x32xf32>, vector<16x32xf32> -> vector<16x32xf32>
    %c3_77 = arith.constant 3 : index
    %c0_78 = arith.constant 0 : index
    %c0_79 = arith.constant 0 : index
    %103 = vector.load %arg5[%c3_77, %c0_78, %c0_79] : memref<4x1x32xf32, #tpu.memory_space<vmem>>, vector<1x1x32xf32>
    %104 = vector.shape_cast %103 : vector<1x1x32xf32> to vector<1x32xf32>
    %105 = vector.broadcast %104 : vector<1x32xf32> to vector<16x32xf32>
    %106 = arith.addf %102, %105 : vector<16x32xf32>
    %107 = vector.extract_strided_slice %106 {offsets = [0, 0], sizes = [16, 16], strides = [1, 1]} : vector<16x32xf32> to vector<16x16xf32>
    %108 = math.tanh %107 : vector<16x16xf32>
    %109 = vector.extract_strided_slice %106 {offsets = [0, 16], sizes = [16, 16], strides = [1, 1]} : vector<16x32xf32> to vector<16x16xf32>
    %110 = arith.negf %109 : vector<16x16xf32>
    %111 = math.exp %110 : vector<16x16xf32>
    %cst_80 = arith.constant 1.000000e+00 : f32
    %112 = vector.broadcast %cst_80 : f32 to vector<16x16xf32>
    %113 = arith.addf %112, %111 : vector<16x16xf32>
    %114 = arith.divf %112, %113 : vector<16x16xf32>
    %115 = arith.mulf %108, %114 : vector<16x16xf32>
    %116 = vector.extract_strided_slice %115 {offsets = [8, 0], sizes = [8, 16], strides = [1, 1]} : vector<16x16xf32> to vector<8x16xf32>
    %117 = tpu.concatenate %26, %56, %86, %116 in 1 : vector<8x16xf32>, vector<8x16xf32>, vector<8x16xf32>, vector<8x16xf32> -> vector<8x64xf32>
    %c0_81 = arith.constant 0 : index
    %c0_82 = arith.constant 0 : index
    %118 = vector.load %arg6[%c0_81, %c0_82] : memref<64x32xf32, #tpu.memory_space<vmem>>, vector<64x32xf32>
    %cst_83 = arith.constant dense<0.000000e+00> : vector<8x32xf32>
    %119 = tpu.matmul %117, %118, %cst_83 {dimension_numbers = #tpu.dot_dimension_numbers<[1], [0], [0], [1], [0, 0, 1, 1], [], []>} : vector<8x64xf32>, vector<64x32xf32>, vector<8x32xf32> -> vector<8x32xf32>
    %c0_84 = arith.constant 0 : index
    %c0_85 = arith.constant 0 : index
    %120 = vector.load %arg7[%c0_84, %c0_85] : memref<1x32xf32, #tpu.memory_space<vmem>>, vector<1x32xf32>
    %121 = vector.broadcast %120 : vector<1x32xf32> to vector<8x32xf32>
    %122 = arith.addf %119, %121 : vector<8x32xf32>
    %cst_86 = arith.constant 0.000000e+00 : f32
    %123 = vector.broadcast %cst_86 : f32 to vector<8x32xf32>
    %124 = arith.maximumf %122, %123 : vector<8x32xf32>
    %c0_87 = arith.constant 0 : index
    %c0_88 = arith.constant 0 : index
    %125 = vector.load %arg10[%c0_87, %c0_88] : memref<32x32xf32, #tpu.memory_space<vmem>>, vector<32x32xf32>
    %cst_89 = arith.constant dense<0.000000e+00> : vector<8x32xf32>
    %126 = tpu.matmul %124, %125, %cst_89 {dimension_numbers = #tpu.dot_dimension_numbers<[1], [0], [0], [1], [0, 0, 1, 1], [], []>} : vector<8x32xf32>, vector<32x32xf32>, vector<8x32xf32> -> vector<8x32xf32>
    %c0_90 = arith.constant 0 : index
    %c0_91 = arith.constant 0 : index
    %127 = vector.load %arg11[%c0_90, %c0_91] : memref<1x32xf32, #tpu.memory_space<vmem>>, vector<1x32xf32>
    %128 = vector.broadcast %127 : vector<1x32xf32> to vector<8x32xf32>
    %129 = arith.addf %126, %128 : vector<8x32xf32>
    %cst_92 = arith.constant 0.000000e+00 : f32
    %130 = vector.broadcast %cst_92 : f32 to vector<8x32xf32>
    %131 = arith.maximumf %129, %130 : vector<8x32xf32>
    %c0_93 = arith.constant 0 : index
    %c0_94 = arith.constant 0 : index
    %132 = vector.load %arg12[%c0_93, %c0_94] : memref<8x4xf32, #tpu.memory_space<vmem>>, vector<8x4xf32>
    %c0_95 = arith.constant 0 : index
    %c0_96 = arith.constant 0 : index
    %133 = vector.load %arg13[%c0_95, %c0_96] : memref<4x8xf32, #tpu.memory_space<vmem>>, vector<4x8xf32>
    %cst_97 = arith.constant dense<0.000000e+00> : vector<8x8xf32>
    %134 = tpu.matmul %132, %133, %cst_97 {dimension_numbers = #tpu.dot_dimension_numbers<[1], [0], [0], [1], [0, 0, 1, 1], [], []>} : vector<8x4xf32>, vector<4x8xf32>, vector<8x8xf32> -> vector<8x8xf32>
    %cst_98 = arith.constant 0.000000e+00 : f32
    %135 = vector.broadcast %cst_98 : f32 to vector<8x8xf32>
    %136 = arith.maximumf %134, %135 : vector<8x8xf32>
    %cst_99 = arith.constant dense<0xFF800000> : vector<8xf32>
    %137 = vector.multi_reduction <maximumf>, %136, %cst_99 [1] : vector<8x8xf32> to vector<8xf32>
    %138 = vector.shape_cast %137 : vector<8xf32> to vector<8x1xf32>
    %139 = vector.broadcast %138 : vector<8x1xf32> to vector<8x8xf32>
    %140 = arith.subf %136, %139 : vector<8x8xf32>
    %141 = math.exp %140 : vector<8x8xf32>
    %cst_100 = arith.constant dense<0.000000e+00> : vector<8xf32>
    %142 = vector.multi_reduction <add>, %141, %cst_100 [1] : vector<8x8xf32> to vector<8xf32>
    %143 = vector.shape_cast %142 : vector<8xf32> to vector<8x1xf32>
    %144 = tpu.reciprocal %143 {approx = true} : vector<8x1xf32> -> vector<8x1xf32>
    %145 = vector.broadcast %144 : vector<8x1xf32> to vector<8x8xf32>
    %146 = arith.mulf %141, %145 : vector<8x8xf32>
    %c0_101 = arith.constant 0 : index
    %c0_102 = arith.constant 0 : index
    %147 = vector.load %arg15[%c0_101, %c0_102] : memref<32x8xf32, #tpu.memory_space<vmem>>, vector<32x8xf32>
    %cst_103 = arith.constant dense<0.000000e+00> : vector<8x8xf32>
    %148 = tpu.matmul %131, %147, %cst_103 {dimension_numbers = #tpu.dot_dimension_numbers<[1], [0], [0], [1], [0, 0, 1, 1], [], []>} : vector<8x32xf32>, vector<32x8xf32>, vector<8x8xf32> -> vector<8x8xf32>
    %149 = vector.extract_strided_slice %148 {offsets = [0, 0], sizes = [8, 4], strides = [1, 1]} : vector<8x8xf32> to vector<8x4xf32>
    %150 = vector.extract_strided_slice %148 {offsets = [0, 4], sizes = [8, 4], strides = [1, 1]} : vector<8x8xf32> to vector<8x4xf32>
    %151 = tpu.concatenate %149, %150 in 0 : vector<8x4xf32>, vector<8x4xf32> -> vector<16x4xf32>
    %c0_104 = arith.constant 0 : index
    %c0_105 = arith.constant 0 : index
    %152 = vector.load %arg14[%c0_104, %c0_105] : memref<8x8xf32, #tpu.memory_space<vmem>>, vector<8x8xf32>
    %153 = tpu.concatenate %152, %146 in 1 : vector<8x8xf32>, vector<8x8xf32> -> vector<8x16xf32>
    %cst_106 = arith.constant dense<0.000000e+00> : vector<8x4xf32>
    %154 = tpu.matmul %153, %151, %cst_106 {dimension_numbers = #tpu.dot_dimension_numbers<[1], [0], [0], [1], [0, 0, 1, 1], [], []>} : vector<8x16xf32>, vector<16x4xf32>, vector<8x4xf32> -> vector<8x4xf32>
    %c0_107 = arith.constant 0 : index
    %c0_108 = arith.constant 0 : index
    %155 = vector.load %arg16[%c0_107, %c0_108] : memref<1x4xf32, #tpu.memory_space<vmem>>, vector<1x4xf32>
    %156 = vector.broadcast %155 : vector<1x4xf32> to vector<8x4xf32>
    %157 = arith.addf %154, %156 : vector<8x4xf32>
    %c0_109 = arith.constant 0 : index
    %c0_110 = arith.constant 0 : index
    %158 = vector.load %arg17[%c0_109, %c0_110] : memref<8x4xf32, #tpu.memory_space<vmem>>, vector<8x4xf32>
    tpu.vector_store %arg17[%c0_109, %c0_110], %157 {strides = array<i32>} : memref<8x4xf32, #tpu.memory_space<vmem>>, vector<8x4xf32>,
    return
  }
  func.func @transform_0(%arg0: i32) -> (i32, i32) {
    %c0_i32 = arith.constant 0 : i32
    %c0_i32_0 = arith.constant 0 : i32
    return %arg0, %c0_i32 : i32, i32
  }
  func.func @transform_1(%arg0: i32) -> (i32, i32) {
    %c0_i32 = arith.constant 0 : i32
    %c0_i32_0 = arith.constant 0 : i32
    %c0_i32_1 = arith.constant 0 : i32
    return %c0_i32, %c0_i32_0 : i32, i32
  }
  func.func @transform_2(%arg0: i32) -> (i32, i32) {
    %c0_i32 = arith.constant 0 : i32
    %c0_i32_0 = arith.constant 0 : i32
    %c0_i32_1 = arith.constant 0 : i32
    return %c0_i32, %c0_i32_0 : i32, i32
  }
  func.func @transform_3(%arg0: i32) -> (i32, i32, i32) {
    %c0_i32 = arith.constant 0 : i32
    %c0_i32_0 = arith.constant 0 : i32
    %c0_i32_1 = arith.constant 0 : i32
    %c0_i32_2 = arith.constant 0 : i32
    return %c0_i32, %c0_i32_0, %c0_i32_1 : i32, i32, i32
  }
  func.func @transform_4(%arg0: i32) -> (i32, i32, i32) {
    %c0_i32 = arith.constant 0 : i32
    %c0_i32_0 = arith.constant 0 : i32
    %c0_i32_1 = arith.constant 0 : i32
    %c0_i32_2 = arith.constant 0 : i32
    return %c0_i32, %c0_i32_0, %c0_i32_1 : i32, i32, i32
  }
  func.func @transform_5(%arg0: i32) -> (i32, i32) {
    %c0_i32 = arith.constant 0 : i32
    %c0_i32_0 = arith.constant 0 : i32
    %c0_i32_1 = arith.constant 0 : i32
    return %c0_i32, %c0_i32_0 : i32, i32
  }
  func.func @transform_6(%arg0: i32) -> (i32, i32) {
    %c0_i32 = arith.constant 0 : i32
    %c0_i32_0 = arith.constant 0 : i32
    %c0_i32_1 = arith.constant 0 : i32
    return %c0_i32, %c0_i32_0 : i32, i32
  }
  func.func @transform_7(%arg0: i32) -> (i32, i32, i32) {
    %c0_i32 = arith.constant 0 : i32
    %c0_i32_0 = arith.constant 0 : i32
    %c0_i32_1 = arith.constant 0 : i32
    %c0_i32_2 = arith.constant 0 : i32
    return %c0_i32, %c0_i32_0, %c0_i32_1 : i32, i32, i32
  }
  func.func @transform_8(%arg0: i32) -> (i32, i32, i32) {
    %c0_i32 = arith.constant 0 : i32
    %c0_i32_0 = arith.constant 0 : i32
    %c0_i32_1 = arith.constant 0 : i32
    %c0_i32_2 = arith.constant 0 : i32
    return %c0_i32, %c0_i32_0, %c0_i32_1 : i32, i32, i32
  }
  func.func @transform_9(%arg0: i32) -> (i32, i32) {
    %c0_i32 = arith.constant 0 : i32
    %c0_i32_0 = arith.constant 0 : i32
    %c0_i32_1 = arith.constant 0 : i32
    return %c0_i32, %c0_i32_0 : i32, i32
  }
  func.func @transform_10(%arg0: i32) -> (i32, i32) {
    %c0_i32 = arith.constant 0 : i32
    %c0_i32_0 = arith.constant 0 : i32
    %c0_i32_1 = arith.constant 0 : i32
    return %c0_i32, %c0_i32_0 : i32, i32
  }
  func.func @transform_11(%arg0: i32) -> (i32, i32) {
    %c0_i32 = arith.constant 0 : i32
    %c0_i32_0 = arith.constant 0 : i32
    %c0_i32_1 = arith.constant 0 : i32
    return %c0_i32, %c0_i32_0 : i32, i32
  }
  func.func @transform_12(%arg0: i32) -> (i32, i32) {
    %c0_i32 = arith.constant 0 : i32
    %c0_i32_0 = arith.constant 0 : i32
    %c0_i32_1 = arith.constant 0 : i32
    return %c0_i32, %c0_i32_0 : i32, i32
  }
  func.func @transform_13(%arg0: i32) -> (i32, i32) {
    %c0_i32 = arith.constant 0 : i32
    %c0_i32_0 = arith.constant 0 : i32
    %c0_i32_1 = arith.constant 0 : i32
    return %c0_i32, %c0_i32_0 : i32, i32
  }
  func.func @transform_14(%arg0: i32) -> (i32, i32) {
    %c0_i32 = arith.constant 0 : i32
    %c0_i32_0 = arith.constant 0 : i32
    %c0_i32_1 = arith.constant 0 : i32
    return %c0_i32, %c0_i32_0 : i32, i32
  }
  func.func @transform_15(%arg0: i32) -> (i32, i32) {
    %c0_i32 = arith.constant 0 : i32
    %c0_i32_0 = arith.constant 0 : i32
    %c0_i32_1 = arith.constant 0 : i32
    return %c0_i32, %c0_i32_0 : i32, i32
  }
  func.func @transform_16(%arg0: i32) -> (i32, i32) {
    %c0_i32 = arith.constant 0 : i32
    %c0_i32_0 = arith.constant 0 : i32
    return %arg0, %c0_i32 : i32, i32
  }
}

</mosaic_0001>

<llo_original>
// kernel: _lambda_.1
$region0: #{_lambda_.1}
  #allocation0 [shape = 'u32[]', space=smem, size = 0x4, offset = 0x4, fixed_abs, tag = 'smem constant byte address 0x4 - core index']
  #allocation1 [shape = 'u32[144,128]{1,0:T(1,128)}', space=vmem, size = 0x12000, scoped, tag = 'internal scratch']
  #allocation2 [shape = 'f32[64,16]{1,0:T(8,128)}', space=vmem, size = 0x8000, scoped, tag = 'scratch operand']
  %s0 = inlined_call_operand.vmem [shape: f32[128,2], index: 0, kind: input, shape index: {}]
  %s1 = inlined_call_operand.vmem [shape: f32[2,16], index: 1, kind: input, shape index: {}]
  %s2 = inlined_call_operand.vmem [shape: f32[1,16], index: 2, kind: input, shape index: {}]
  %s3 = inlined_call_operand.vmem [shape: f32[4,32,32], index: 3, kind: input, shape index: {}]
  %s4 = inlined_call_operand.vmem [shape: f32[4,1,32], index: 4, kind: input, shape index: {}]
  %s5 = inlined_call_operand.vmem [shape: f32[64,32], index: 5, kind: input, shape index: {}]
  %s6 = inlined_call_operand.vmem [shape: f32[1,32], index: 6, kind: input, shape index: {}]
  %s7 = inlined_call_operand.vmem [shape: f32[4,16,16], index: 7, kind: input, shape index: {}]
  %s8 = inlined_call_operand.vmem [shape: f32[4,1,16], index: 8, kind: input, shape index: {}]
  %s9 = inlined_call_operand.vmem [shape: f32[32,32], index: 9, kind: input, shape index: {}]
  %s10 = inlined_call_operand.hbm [shape: f32[1,32], index: 10, kind: input, shape index: {}]
  %s11 = inlined_call_operand.vmem [shape: f32[8,4], index: 11, kind: input, shape index: {}]
  %s12 = inlined_call_operand.vmem [shape: f32[4,8], index: 12, kind: input, shape index: {}]
  %s13 = inlined_call_operand.vmem [shape: f32[8,8], index: 13, kind: input, shape index: {}]
  %s14 = inlined_call_operand.vmem [shape: f32[32,8], index: 14, kind: input, shape index: {}]
  %s15 = inlined_call_operand.hbm [shape: f32[1,4], index: 15, kind: input, shape index: {}]
  %s16 = inlined_call_operand.vmem [shape: f32[16,4], index: 16, kind: output, shape index: {}]
  %s17 = sld [smem:[#allocation0]]
  $region105: #{_lambda_.1} parent=0
    _
  %s19 = ssub.s32 1, %s17
  %s20 = scalar_select 0, %s19, %s17
  $region1: #{_lambda_.1} parent=0
    #allocation3 [shape = 'u8[512]{0}', space=vmem, size = 0x400, scoped, tag = 'input window, operand 10, single buffered']
    #allocation4 [shape = 's32[2]{0}', space=sflag, size = 0x8, scoped, tag = 'scoped memory for _lambda_.1']
    #allocation5 [shape = 'u8[512]{0}', space=vmem, size = 0x400, scoped, tag = 'input window, operand 15, single buffered']
    #allocation6 [shape = 's32[1]{0}', space=sflag, size = 0x4, scoped, tag = 'scoped memory for _lambda_.1']
    %21 = vsyncpa [#allocation4], 0
    %22 = vsyncpa [#allocation6], 0
    loop: start=0, step=1, limit=4
    $region2: #{_lambda_.1} parent=1 // loop_pre_header
      _
    $region3: #{_lambda_.1} parent=1 // loop_header
      %s24 = sphi 0, %s28
      %p25 = scmp.ge.s32.totalorder %s24, 4
      %s34 = sphi 0, %s36
      %s37 = sphi 0, %s34
      %s38 = sphi 0, %s37
      %s54 = sphi 0, %s38
      %s58 = sphi 0, %s58
      %s60 = sphi 0, %s58
      %s61 = sphi 0, %s60
      %s75 = sphi 0, %s61
      %s79 = sphi 0, %s79
      %s81 = sphi 0, %s79
      %s82 = sphi 0, %s81
      %s96 = sphi 0, %s82
      %s100 = sphi 0, %s100
      %s102 = sphi 0, %s100
      %s103 = sphi 0, %s102
      %s117 = sphi 0, %s103
      %s121 = sphi 0, %s121
      %s123 = sphi 0, %s121
      %s124 = sphi 0, %s123
      %s138 = sphi 0, %s124
      %s142 = sphi 0, %s142
      %s144 = sphi 0, %s142
      %s145 = sphi 0, %s144
      %s159 = sphi 0, %s145
      %s163 = sphi 0, %s163
      %s165 = sphi 0, %s163
      %s166 = sphi 0, %s165
      %s180 = sphi 0, %s166
      %s184 = sphi 0, %s184
      %s186 = sphi 0, %s184
      %s187 = sphi 0, %s186
      %s201 = sphi 0, %s187
      %s205 = sphi 0, %s205
      %s207 = sphi 0, %s205
      %s208 = sphi 0, %s207
      %s222 = sphi 0, %s208
      %s226 = sphi 0, %s226
      %s228 = sphi 0, %s226
      %s229 = sphi 0, %s228
      %s243 = sphi 0, %s229
      %s247 = sphi 0, %s247
      %s249 = sphi 0, %s247
      %s250 = sphi 0, %s249
      %s264 = sphi 0, %s250
      %s268 = sphi 0, %s268
      %s270 = sphi 0, %s268
      %s271 = sphi 0, %s270
      %s285 = sphi 0, %s271
      %s289 = sphi 0, %s289
      %s291 = sphi 0, %s289
      %s292 = sphi 0, %s291
      %s306 = sphi 0, %s292
      %s310 = sphi 0, %s310
      %s312 = sphi 0, %s310
      %s313 = sphi 0, %s312
      %s327 = sphi 0, %s313
      %s331 = sphi 0, %s331
      %s333 = sphi 0, %s331
      %s334 = sphi 0, %s333
      %s348 = sphi 0, %s334
      %s352 = sphi 0, %s352
      %s354 = sphi 0, %s352
      %s355 = sphi 0, %s354
      %s369 = sphi 0, %s355
      %s375 = sphi 0, %s377
      %s378 = sphi 0, %s375
      %s379 = sphi 0, %s378
      %s395 = sphi 0, %s379
    $region4: #{_lambda_.1} parent=1 // loop_header_branch
      %27 = sbr.rel (%p25) target = $region8
    $region5: #{_lambda_.1} parent=1 // loop_body
      %s29 = ssub.s32 %s24, 1
      %s30 = ssub.s32 %s24, 2
      %s31 = sadd.s32 %s24, 1
      %s32 = ssub.s32 %s24, %s31
      %p33 = scmp.eq.s32.totalorder %s32, 0
      %s35 = sadd.s32 %s34, 1
      %s36 = scalar_select %p33, %s34, %s35
      %p39 = pneg %p33
      %p40 = scmp.eq.s32.totalorder %s24, 1
      %p41 = por %p39, %p40
      %p42 = scmp.ne.s32.totalorder %s34, %s37
      %p43 = scmp.eq.s32.totalorder %s24, 0
      %p44 = por %p42, %p43
      %p45 = scmp.ne.s32.totalorder %s34, %s37
      %p46 = scmp.eq.s32.totalorder %s29, 1
      %p47 = por %p45, %p46
      %p48 = scmp.ne.s32.totalorder %s37, %s38
      %p49 = scmp.eq.s32.totalorder %s29, 0
      %p50 = por %p48, %p49
      %p51 = scmp.ne.s32.totalorder %s37, %s38
      %p52 = scmp.eq.s32.totalorder %s30, 1
      %p53 = por %p51, %p52
      %p55 = scmp.ne.s32.totalorder %s38, %s54
      %p56 = scmp.eq.s32.totalorder %s30, 0
      %p57 = por %p55, %p56
      %s59 = sadd.s32 %s58, 1
      %p62 = scmp.eq.s32.totalorder %s24, 1
      %p63 = scmp.ne.s32.totalorder %s58, %s60
      %p64 = scmp.eq.s32.totalorder %s24, 0
      %p65 = por %p63, %p64
      %p66 = scmp.ne.s32.totalorder %s58, %s60
      %p67 = scmp.eq.s32.totalorder %s29, 1
      %p68 = por %p66, %p67
      %p69 = scmp.ne.s32.totalorder %s60, %s61
      %p70 = scmp.eq.s32.totalorder %s29, 0
      %p71 = por %p69, %p70
      %p72 = scmp.ne.s32.totalorder %s60, %s61
      %p73 = scmp.eq.s32.totalorder %s30, 1
      %p74 = por %p72, %p73
      %p76 = scmp.ne.s32.totalorder %s61, %s75
      %p77 = scmp.eq.s32.totalorder %s30, 0
      %p78 = por %p76, %p77
      %s80 = sadd.s32 %s79, 1
      %p83 = scmp.eq.s32.totalorder %s24, 1
      %p84 = scmp.ne.s32.totalorder %s79, %s81
      %p85 = scmp.eq.s32.totalorder %s24, 0
      %p86 = por %p84, %p85
      %p87 = scmp.ne.s32.totalorder %s79, %s81
      %p88 = scmp.eq.s32.totalorder %s29, 1
      %p89 = por %p87, %p88
      %p90 = scmp.ne.s32.totalorder %s81, %s82
      %p91 = scmp.eq.s32.totalorder %s29, 0
      %p92 = por %p90, %p91
      %p93 = scmp.ne.s32.totalorder %s81, %s82
      %p94 = scmp.eq.s32.totalorder %s30, 1
      %p95 = por %p93, %p94
      %p97 = scmp.ne.s32.totalorder %s82, %s96
      %p98 = scmp.eq.s32.totalorder %s30, 0
      %p99 = por %p97, %p98
      %s101 = sadd.s32 %s100, 1
      %p104 = scmp.eq.s32.totalorder %s24, 1
      %p105 = scmp.ne.s32.totalorder %s100, %s102
      %p106 = scmp.eq.s32.totalorder %s24, 0
      %p107 = por %p105, %p106
      %p108 = scmp.ne.s32.totalorder %s100, %s102
      %p109 = scmp.eq.s32.totalorder %s29, 1
      %p110 = por %p108, %p109
      %p111 = scmp.ne.s32.totalorder %s102, %s103
      %p112 = scmp.eq.s32.totalorder %s29, 0
      %p113 = por %p111, %p112
      %p114 = scmp.ne.s32.totalorder %s102, %s103
      %p115 = scmp.eq.s32.totalorder %s30, 1
      %p116 = por %p114, %p115
      %p118 = scmp.ne.s32.totalorder %s103, %s117
      %p119 = scmp.eq.s32.totalorder %s30, 0
      %p120 = por %p118, %p119
      %s122 = sadd.s32 %s121, 1
      %p125 = scmp.eq.s32.totalorder %s24, 1
      %p126 = scmp.ne.s32.totalorder %s121, %s123
      %p127 = scmp.eq.s32.totalorder %s24, 0
      %p128 = por %p126, %p127
      %p129 = scmp.ne.s32.totalorder %s121, %s123
      %p130 = scmp.eq.s32.totalorder %s29, 1
      %p131 = por %p129, %p130
      %p132 = scmp.ne.s32.totalorder %s123, %s124
      %p133 = scmp.eq.s32.totalorder %s29, 0
      %p134 = por %p132, %p133
      %p135 = scmp.ne.s32.totalorder %s123, %s124
      %p136 = scmp.eq.s32.totalorder %s30, 1
      %p137 = por %p135, %p136
      %p139 = scmp.ne.s32.totalorder %s124, %s138
      %p140 = scmp.eq.s32.totalorder %s30, 0
      %p141 = por %p139, %p140
      %s143 = sadd.s32 %s142, 1
      %p146 = scmp.eq.s32.totalorder %s24, 1
      %p147 = scmp.ne.s32.totalorder %s142, %s144
      %p148 = scmp.eq.s32.totalorder %s24, 0
      %p149 = por %p147, %p148
      %p150 = scmp.ne.s32.totalorder %s142, %s144
      %p151 = scmp.eq.s32.totalorder %s29, 1
      %p152 = por %p150, %p151
      %p153 = scmp.ne.s32.totalorder %s144, %s145
      %p154 = scmp.eq.s32.totalorder %s29, 0
      %p155 = por %p153, %p154
      %p156 = scmp.ne.s32.totalorder %s144, %s145
      %p157 = scmp.eq.s32.totalorder %s30, 1
      %p158 = por %p156, %p157
      %p160 = scmp.ne.s32.totalorder %s145, %s159
      %p161 = scmp.eq.s32.totalorder %s30, 0
      %p162 = por %p160, %p161
      %s164 = sadd.s32 %s163, 1
      %p167 = scmp.eq.s32.totalorder %s24, 1
      %p168 = scmp.ne.s32.totalorder %s163, %s165
      %p169 = scmp.eq.s32.totalorder %s24, 0
      %p170 = por %p168, %p169
      %p171 = scmp.ne.s32.totalorder %s163, %s165
      %p172 = scmp.eq.s32.totalorder %s29, 1
      %p173 = por %p171, %p172
      %p174 = scmp.ne.s32.totalorder %s165, %s166
      %p175 = scmp.eq.s32.totalorder %s29, 0
      %p176 = por %p174, %p175
      %p177 = scmp.ne.s32.totalorder %s165, %s166
      %p178 = scmp.eq.s32.totalorder %s30, 1
      %p179 = por %p177, %p178
      %p181 = scmp.ne.s32.totalorder %s166, %s180
      %p182 = scmp.eq.s32.totalorder %s30, 0
      %p183 = por %p181, %p182
      %s185 = sadd.s32 %s184, 1
      %p188 = scmp.eq.s32.totalorder %s24, 1
      %p189 = scmp.ne.s32.totalorder %s184, %s186
      %p190 = scmp.eq.s32.totalorder %s24, 0
      %p191 = por %p189, %p190
      %p192 = scmp.ne.s32.totalorder %s184, %s186
      %p193 = scmp.eq.s32.totalorder %s29, 1
      %p194 = por %p192, %p193
      %p195 = scmp.ne.s32.totalorder %s186, %s187
      %p196 = scmp.eq.s32.totalorder %s29, 0
      %p197 = por %p195, %p196
      %p198 = scmp.ne.s32.totalorder %s186, %s187
      %p199 = scmp.eq.s32.totalorder %s30, 1
      %p200 = por %p198, %p199
      %p202 = scmp.ne.s32.totalorder %s187, %s201
      %p203 = scmp.eq.s32.totalorder %s30, 0
      %p204 = por %p202, %p203
      %s206 = sadd.s32 %s205, 1
      %p209 = scmp.eq.s32.totalorder %s24, 1
      %p210 = scmp.ne.s32.totalorder %s205, %s207
      %p211 = scmp.eq.s32.totalorder %s24, 0
      %p212 = por %p210, %p211
      %p213 = scmp.ne.s32.totalorder %s205, %s207
      %p214 = scmp.eq.s32.totalorder %s29, 1
      %p215 = por %p213, %p214
      %p216 = scmp.ne.s32.totalorder %s207, %s208
      %p217 = scmp.eq.s32.totalorder %s29, 0
      %p218 = por %p216, %p217
      %p219 = scmp.ne.s32.totalorder %s207, %s208
      %p220 = scmp.eq.s32.totalorder %s30, 1
      %p221 = por %p219, %p220
      %p223 = scmp.ne.s32.totalorder %s208, %s222
      %p224 = scmp.eq.s32.totalorder %s30, 0
      %p225 = por %p223, %p224
      %s227 = sadd.s32 %s226, 1
      %p230 = scmp.eq.s32.totalorder %s24, 1
      %p231 = scmp.ne.s32.totalorder %s226, %s228
      %p232 = scmp.eq.s32.totalorder %s24, 0
      %p233 = por %p231, %p232
      %p234 = scmp.ne.s32.totalorder %s226, %s228
      %p235 = scmp.eq.s32.totalorder %s29, 1
      %p236 = por %p234, %p235
      %p237 = scmp.ne.s32.totalorder %s228, %s229
      %p238 = scmp.eq.s32.totalorder %s29, 0
      %p239 = por %p237, %p238
      %p240 = scmp.ne.s32.totalorder %s228, %s229
      %p241 = scmp.eq.s32.totalorder %s30, 1
      %p242 = por %p240, %p241
      %p244 = scmp.ne.s32.totalorder %s229, %s243
      %p245 = scmp.eq.s32.totalorder %s30, 0
      %p246 = por %p244, %p245
      %s248 = sadd.s32 %s247, 1
      %p251 = scmp.eq.s32.totalorder %s24, 1
      %p252 = scmp.ne.s32.totalorder %s247, %s249
      %p253 = scmp.eq.s32.totalorder %s24, 0
      %p254 = por %p252, %p253
      %p255 = scmp.ne.s32.totalorder %s247, %s249
      %p256 = scmp.eq.s32.totalorder %s29, 1
      %p257 = por %p255, %p256
      %p258 = scmp.ne.s32.totalorder %s249, %s250
      %p259 = scmp.eq.s32.totalorder %s29, 0
      %p260 = por %p258, %p259
      %p261 = scmp.ne.s32.totalorder %s249, %s250
      %p262 = scmp.eq.s32.totalorder %s30, 1
      %p263 = por %p261, %p262
      %p265 = scmp.ne.s32.totalorder %s250, %s264
      %p266 = scmp.eq.s32.totalorder %s30, 0
      %p267 = por %p265, %p266
      %s269 = sadd.s32 %s268, 1
      %p272 = scmp.eq.s32.totalorder %s24, 1
      %p273 = scmp.ne.s32.totalorder %s268, %s270
      %p274 = scmp.eq.s32.totalorder %s24, 0
      %p275 = por %p273, %p274
      %p276 = scmp.ne.s32.totalorder %s268, %s270
      %p277 = scmp.eq.s32.totalorder %s29, 1
      %p278 = por %p276, %p277
      %p279 = scmp.ne.s32.totalorder %s270, %s271
      %p280 = scmp.eq.s32.totalorder %s29, 0
      %p281 = por %p279, %p280
      %p282 = scmp.ne.s32.totalorder %s270, %s271
      %p283 = scmp.eq.s32.totalorder %s30, 1
      %p284 = por %p282, %p283
      %p286 = scmp.ne.s32.totalorder %s271, %s285
      %p287 = scmp.eq.s32.totalorder %s30, 0
      %p288 = por %p286, %p287
      %s290 = sadd.s32 %s289, 1
      %p293 = scmp.eq.s32.totalorder %s24, 1
      %p294 = scmp.ne.s32.totalorder %s289, %s291
      %p295 = scmp.eq.s32.totalorder %s24, 0
      %p296 = por %p294, %p295
      %p297 = scmp.ne.s32.totalorder %s289, %s291
      %p298 = scmp.eq.s32.totalorder %s29, 1
      %p299 = por %p297, %p298
      %p300 = scmp.ne.s32.totalorder %s291, %s292
      %p301 = scmp.eq.s32.totalorder %s29, 0
      %p302 = por %p300, %p301
      %p303 = scmp.ne.s32.totalorder %s291, %s292
      %p304 = scmp.eq.s32.totalorder %s30, 1
      %p305 = por %p303, %p304
      %p307 = scmp.ne.s32.totalorder %s292, %s306
      %p308 = scmp.eq.s32.totalorder %s30, 0
      %p309 = por %p307, %p308
      %s311 = sadd.s32 %s310, 1
      %p314 = scmp.eq.s32.totalorder %s24, 1
      %p315 = scmp.ne.s32.totalorder %s310, %s312
      %p316 = scmp.eq.s32.totalorder %s24, 0
      %p317 = por %p315, %p316
      %p318 = scmp.ne.s32.totalorder %s310, %s312
      %p319 = scmp.eq.s32.totalorder %s29, 1
      %p320 = por %p318, %p319
      %p321 = scmp.ne.s32.totalorder %s312, %s313
      %p322 = scmp.eq.s32.totalorder %s29, 0
      %p323 = por %p321, %p322
      %p324 = scmp.ne.s32.totalorder %s312, %s313
      %p325 = scmp.eq.s32.totalorder %s30, 1
      %p326 = por %p324, %p325
      %p328 = scmp.ne.s32.totalorder %s313, %s327
      %p329 = scmp.eq.s32.totalorder %s30, 0
      %p330 = por %p328, %p329
      %s332 = sadd.s32 %s331, 1
      %p335 = scmp.eq.s32.totalorder %s24, 1
      %p336 = scmp.ne.s32.totalorder %s331, %s333
      %p337 = scmp.eq.s32.totalorder %s24, 0
      %p338 = por %p336, %p337
      %p339 = scmp.ne.s32.totalorder %s331, %s333
      %p340 = scmp.eq.s32.totalorder %s29, 1
      %p341 = por %p339, %p340
      %p342 = scmp.ne.s32.totalorder %s333, %s334
      %p343 = scmp.eq.s32.totalorder %s29, 0
      %p344 = por %p342, %p343
      %p345 = scmp.ne.s32.totalorder %s333, %s334
      %p346 = scmp.eq.s32.totalorder %s30, 1
      %p347 = por %p345, %p346
      %p349 = scmp.ne.s32.totalorder %s334, %s348
      %p350 = scmp.eq.s32.totalorder %s30, 0
      %p351 = por %p349, %p350
      %s353 = sadd.s32 %s352, 1
      %p356 = scmp.eq.s32.totalorder %s24, 1
      %p357 = scmp.ne.s32.totalorder %s352, %s354
      %p358 = scmp.eq.s32.totalorder %s24, 0
      %p359 = por %p357, %p358
      %p360 = scmp.ne.s32.totalorder %s352, %s354
      %p361 = scmp.eq.s32.totalorder %s29, 1
      %p362 = por %p360, %p361
      %p363 = scmp.ne.s32.totalorder %s354, %s355
      %p364 = scmp.eq.s32.totalorder %s29, 0
      %p365 = por %p363, %p364
      %p366 = scmp.ne.s32.totalorder %s354, %s355
      %p367 = scmp.eq.s32.totalorder %s30, 1
      %p368 = por %p366, %p367
      %p370 = scmp.ne.s32.totalorder %s355, %s369
      %p371 = scmp.eq.s32.totalorder %s30, 0
      %p372 = por %p370, %p371
      %s373 = ssub.s32 %s24, %s31
      %p374 = scmp.eq.s32.totalorder %s373, 0
      %s376 = sadd.s32 %s375, 1
      %s377 = scalar_select %p374, %s375, %s376
      %p380 = pneg %p374
      %p381 = scmp.eq.s32.totalorder %s24, 1
      %p382 = por %p380, %p381
      %p383 = scmp.ne.s32.totalorder %s375, %s378
      %p384 = scmp.eq.s32.totalorder %s24, 0
      %p385 = por %p383, %p384
      %p386 = scmp.ne.s32.totalorder %s375, %s378
      %p387 = scmp.eq.s32.totalorder %s29, 1
      %p388 = por %p386, %p387
      %p389 = scmp.ne.s32.totalorder %s378, %s379
      %p390 = scmp.eq.s32.totalorder %s29, 0
      %p391 = por %p389, %p390
      %p392 = scmp.ne.s32.totalorder %s378, %s379
      %p393 = scmp.eq.s32.totalorder %s30, 1
      %p394 = por %p392, %p393
      %p396 = scmp.ne.s32.totalorder %s379, %s395
      %p397 = scmp.eq.s32.totalorder %s30, 0
      %p398 = por %p396, %p397
      %p399 = scmp.le.s32.totalorder 1, %s24
      %p400 = scmp.lt.s32.totalorder %s24, 3
      %p401 = pnand %p399, %p400
      %p402 = pneg %p401
      // Predicated region
      $region9: #{_lambda_.1} parent=5 // pred_check
        _
      $region10: #{_lambda_.1} parent=5 // pred_check_branch
        %404 = sbr.rel (%p401) target = $region12
      $region11: #{_lambda_.1} parent=5 // pred_region
        %s405 = ssub.s32 %s24, 1
        // Predicated region
        $region13: #{_lambda_.1} parent=11 // pred_check
          %p406 = pneg %p71
        $region14: #{_lambda_.1} parent=11 // pred_check_branch
          %408 = sbr.rel (%p406) target = $region16
        $region15: #{_lambda_.1} parent=11 // pred_region
          _
        $region16: #{_lambda_.1} parent=11 // pred_fallthru
          _
        // Predicated region
        $region17: #{_lambda_.1} parent=11 // pred_check
          %p409 = pneg %p92
        $region18: #{_lambda_.1} parent=11 // pred_check_branch
          %411 = sbr.rel (%p409) target = $region20
        $region19: #{_lambda_.1} parent=11 // pred_region
          _
        $region20: #{_lambda_.1} parent=11 // pred_fallthru
          _
        // Predicated region
        $region21: #{_lambda_.1} parent=11 // pred_check
          %p412 = pneg %p113
        $region22: #{_lambda_.1} parent=11 // pred_check_branch
          %414 = sbr.rel (%p412) target = $region24
        $region23: #{_lambda_.1} parent=11 // pred_region
          _
        $region24: #{_lambda_.1} parent=11 // pred_fallthru
          _
        // Predicated region
        $region25: #{_lambda_.1} parent=11 // pred_check
          %p415 = pneg %p134
        $region26: #{_lambda_.1} parent=11 // pred_check_branch
          %417 = sbr.rel (%p415) target = $region28
        $region27: #{_lambda_.1} parent=11 // pred_region
          _
        $region28: #{_lambda_.1} parent=11 // pred_fallthru
          _
        // Predicated region
        $region29: #{_lambda_.1} parent=11 // pred_check
          %p418 = pneg %p155
        $region30: #{_lambda_.1} parent=11 // pred_check_branch
          %420 = sbr.rel (%p418) target = $region32
        $region31: #{_lambda_.1} parent=11 // pred_region
          _
        $region32: #{_lambda_.1} parent=11 // pred_fallthru
          _
        // Predicated region
        $region33: #{_lambda_.1} parent=11 // pred_check
          %p421 = pneg %p176
        $region34: #{_lambda_.1} parent=11 // pred_check_branch
          %423 = sbr.rel (%p421) target = $region36
        $region35: #{_lambda_.1} parent=11 // pred_region
          _
        $region36: #{_lambda_.1} parent=11 // pred_fallthru
          _
        // Predicated region
        $region37: #{_lambda_.1} parent=11 // pred_check
          %p424 = pneg %p197
        $region38: #{_lambda_.1} parent=11 // pred_check_branch
          %426 = sbr.rel (%p424) target = $region40
        $region39: #{_lambda_.1} parent=11 // pred_region
          _
        $region40: #{_lambda_.1} parent=11 // pred_fallthru
          _
        // Predicated region
        $region41: #{_lambda_.1} parent=11 // pred_check
          %p427 = pneg %p218
        $region42: #{_lambda_.1} parent=11 // pred_check_branch
          %429 = sbr.rel (%p427) target = $region44
        $region43: #{_lambda_.1} parent=11 // pred_region
          _
        $region44: #{_lambda_.1} parent=11 // pred_fallthru
          _
        // Predicated region
        $region45: #{_lambda_.1} parent=11 // pred_check
          %p430 = pneg %p239
        $region46: #{_lambda_.1} parent=11 // pred_check_branch
          %432 = sbr.rel (%p430) target = $region48
        $region47: #{_lambda_.1} parent=11 // pred_region
          _
        $region48: #{_lambda_.1} parent=11 // pred_fallthru
          _
        // Predicated region
        $region49: #{_lambda_.1} parent=11 // pred_check
          %p433 = pneg %p260
        $region50: #{_lambda_.1} parent=11 // pred_check_branch
          %435 = sbr.rel (%p433) target = $region52
        $region51: #{_lambda_.1} parent=11 // pred_region
          %s437 = ssub.s32 16, 16
          %438 = vsyncadd [#allocation4], %s437
          %s440 = sshll.u32 [#allocation3], 4
          %s441 = int_to_ptr.vmem [resolvable:$true] %s440
          %443 = dma.hbm_to_vmem [thread:$0]  %s10, 16, %s441, [#allocation4]
        $region52: #{_lambda_.1} parent=11 // pred_fallthru
          _
        // Predicated region
        $region53: #{_lambda_.1} parent=11 // pred_check
          %p444 = pneg %p281
        $region54: #{_lambda_.1} parent=11 // pred_check_branch
          %446 = sbr.rel (%p444) target = $region56
        $region55: #{_lambda_.1} parent=11 // pred_region
          _
        $region56: #{_lambda_.1} parent=11 // pred_fallthru
          _
        // Predicated region
        $region57: #{_lambda_.1} parent=11 // pred_check
          %p447 = pneg %p302
        $region58: #{_lambda_.1} parent=11 // pred_check_branch
          %449 = sbr.rel (%p447) target = $region60
        $region59: #{_lambda_.1} parent=11 // pred_region
          _
        $region60: #{_lambda_.1} parent=11 // pred_fallthru
          _
        // Predicated region
        $region61: #{_lambda_.1} parent=11 // pred_check
          %p450 = pneg %p323
        $region62: #{_lambda_.1} parent=11 // pred_check_branch
          %452 = sbr.rel (%p450) target = $region64
        $region63: #{_lambda_.1} parent=11 // pred_region
          _
        $region64: #{_lambda_.1} parent=11 // pred_fallthru
          _
        // Predicated region
        $region65: #{_lambda_.1} parent=11 // pred_check
          %p453 = pneg %p344
        $region66: #{_lambda_.1} parent=11 // pred_check_branch
          %455 = sbr.rel (%p453) target = $region68
        $region67: #{_lambda_.1} parent=11 // pred_region
          _
        $region68: #{_lambda_.1} parent=11 // pred_fallthru
          _
        // Predicated region
        $region69: #{_lambda_.1} parent=11 // pred_check
          %p456 = pneg %p365
        $region70: #{_lambda_.1} parent=11 // pred_check_branch
          %458 = sbr.rel (%p456) target = $region72
        $region71: #{_lambda_.1} parent=11 // pred_region
          %s460 = ssub.s32 16, 16
          %461 = vsyncadd [#allocation6], %s460
          %s463 = sshll.u32 [#allocation5], 4
          %s464 = int_to_ptr.vmem [resolvable:$true] %s463
          %466 = dma.hbm_to_vmem [thread:$0]  %s15, 16, %s464, [#allocation6]
        $region72: #{_lambda_.1} parent=11 // pred_fallthru
          _
      $region12: #{_lambda_.1} parent=5 // pred_fallthru
        _
      %p467 = scmp.lt.s32.totalorder %s24, 2
      // Predicated region
      $region73: #{_lambda_.1} parent=5 // pred_check
        %p468 = pneg %p467
      $region74: #{_lambda_.1} parent=5 // pred_check_branch
        %470 = sbr.rel (%p468) target = $region76
      $region75: #{_lambda_.1} parent=5 // pred_region
        // Predicated region
        $region77: #{_lambda_.1} parent=75 // pred_check
          %p471 = pneg %p44
        $region78: #{_lambda_.1} parent=75 // pred_check_branch
          %473 = sbr.rel (%p471) target = $region80
        $region79: #{_lambda_.1} parent=75 // pred_region
          %s474 = smul.u32 8, %s24
          %p475 = scmp.lt.s32.totalorder %s474, 15
          %s476 = scalar_select %p475, %s474, 15
          %s477 = smul.addr %s476, 8
          %s478 = scalar_lea.vmem %s0, %s477
          %s479 = smul.u32 8, %s24
        $region80: #{_lambda_.1} parent=75 // pred_fallthru
          _
      $region76: #{_lambda_.1} parent=5 // pred_fallthru
        _
      %p480 = scmp.le.s32.totalorder 1, %s24
      %p481 = scmp.lt.s32.totalorder %s24, 3
      %p482 = pnand %p480, %p481
      %p483 = pneg %p482
      // Predicated region
      $region81: #{_lambda_.1} parent=5 // pred_check
        _
      $region82: #{_lambda_.1} parent=5 // pred_check_branch
        %485 = sbr.rel (%p482) target = $region84
      $region83: #{_lambda_.1} parent=5 // pred_region
        %s486 = ssub.s32 %s24, 1
        // Predicated region
        $region85: #{_lambda_.1} parent=83 // pred_check
          %p487 = pneg %p260
        $region86: #{_lambda_.1} parent=83 // pred_check_branch
          %489 = sbr.rel (%p487) target = $region88
        $region87: #{_lambda_.1} parent=83 // pred_region
          %490 = dma.done [#allocation4], 16
        $region88: #{_lambda_.1} parent=83 // pred_fallthru
          _
        // Predicated region
        $region89: #{_lambda_.1} parent=83 // pred_check
          %p491 = pneg %p365
        $region90: #{_lambda_.1} parent=83 // pred_check_branch
          %493 = sbr.rel (%p491) target = $region92
        $region91: #{_lambda_.1} parent=83 // pred_region
          %494 = dma.done [#allocation6], 16
        $region92: #{_lambda_.1} parent=83 // pred_fallthru
          _
        %s495 = smul.u32 8, %s29
        %p496 = scmp.lt.s32.totalorder %s495, 15
        %s497 = scalar_select %p496, %s495, 15
        %s498 = smul.addr %s497, 8
        %s499 = scalar_lea.vmem %s0, %s498
        %p500 = pneg %p50
        %p501 = pneg %p47
        %p502 = pneg %p71
        %p503 = pneg %p68
        %p504 = pneg %p92
        %p505 = pneg %p89
        %p506 = pneg %p113
        %p507 = pneg %p110
        %p508 = pneg %p134
        %p509 = pneg %p131
        %p510 = pneg %p155
        %p511 = pneg %p152
        %p512 = pneg %p176
        %p513 = pneg %p173
        %p514 = pneg %p197
        %p515 = pneg %p194
        %p516 = pneg %p218
        %p517 = pneg %p215
        %p518 = pneg %p239
        %p519 = pneg %p236
        %p520 = pneg %p260
        %p521 = pneg %p257
        %p522 = pneg %p281
        %p523 = pneg %p278
        %p524 = pneg %p302
        %p525 = pneg %p299
        %p526 = pneg %p323
        %p527 = pneg %p320
        %p528 = pneg %p344
        %p529 = pneg %p341
        %p530 = pneg %p365
        %p531 = pneg %p362
        %p532 = pneg %p391
        %p533 = pneg %p388
        %p534 = scmp.lt.s32.totalorder %s29, 1
        %s535 = scalar_select %p534, %s29, 1
        %s536 = smul.addr %s535, 8
        %s537 = scalar_lea.vmem %s16, %s536
        %s538 = smul.u32 8, %s29
        %p539 = scmp.lt.s32.totalorder %s538, 15
        %s540 = scalar_select %p539, %s538, 15
        %s541 = smul.addr %s540, 8
        %s542 = scalar_lea.vmem %s0, %s541
        %s543 = smul.u32 8, %s29
        %p544 = scmp.lt.s32.totalorder %s29, 1
        %s545 = scalar_select %p544, %s29, 1
        %s546 = smul.addr %s545, 8
        %s547 = scalar_lea.vmem %s16, %s546
        %v548 = vld [vmem:[%s542] sm:$0xff]
        %v549 = vld [vmem:[%s542 + $0x8] sm:$0xff]
        %v550 = vld [vmem:[%s542 + $0x10] sm:$0xff]
        %v551 = vld [vmem:[%s542 + $0x18] sm:$0xff]
        %v552 = vld [vmem:[%s542 + $0x20] sm:$0xff]
        %v553 = vld [vmem:[%s542 + $0x28] sm:$0xff]
        %v554 = vld [vmem:[%s542 + $0x30] sm:$0xff]
        %v555 = vld [vmem:[%s542 + $0x38] sm:$0xff]
        %v556 = vld [vmem:[%s1] sm:$0x3]
        %v557 = vld [vmem:[%s2] sm:$0x1]
        %v559 = vlaneseq
        %v560 = vshrl.u32 %v559, 7
        %v561 = vsub.s32 0, %v560
        %v562 = vrot.slane %v557, %v561
        %vm564 = vcmask 15360
        %v566 = vsel %vm564, %v548, 0
        %v569 = vsel %vm564, %v549, 0
        %v572 = vsel %vm564, %v550, 0
        %v575 = vsel %vm564, %v551, 0
        %v578 = vsel %vm564, %v552, 0
        %v581 = vsel %vm564, %v553, 0
        %v584 = vsel %vm564, %v554, 0
        %v587 = vsel %vm564, %v555, 0
        %vm589 = vcmask 1041408
        %v591 = vsel %vm589, %v556, 0
        %593 = vmatprep.subr.mxu0 0.0
        %594 = vmatpush1.msra.mxu0 0.0
        %595 = vmatprep.subr.mxu0 0.0
        %596 = vmatpush1.msra.mxu0 0.0
        %597 = vmatprep.subr.mxu0 0.0
        %598 = vmatpush1.msra.mxu0 0.0
        %599 = vmatprep.subr.mxu0 0.0
        %600 = vmatpush1.msra.mxu0 0.0
        %601 = vmatprep.subr.mxu0 0.0
        %602 = vmatpush1.msra.mxu0 0.0
        %603 = vmatprep.subr.mxu0 0.0
        %604 = vmatpush1.msra.mxu0 0.0
        %605 = vmatprep.subr.mxu0 0.0
        %606 = vmatpush1.msra.mxu0 0.0
        %607 = vmatprep.subr.mxu0 0.0
        %608 = vmatpush1.msra.mxu0 0.0
        %609 = vmatprep.subr.mxu0 0.0
        %610 = vmatpush1.msra.mxu0 0.0
        %611 = vmatprep.subr.mxu0 0.0
        %612 = vmatpush1.msra.mxu0 0.0
        %613 = vmatprep.subr.mxu0 0.0
        %614 = vmatpush1.msra.mxu0 0.0
        %615 = vmatprep.subr.mxu0 0.0
        %616 = vmatpush1.msra.mxu0 0.0
        %617 = vmatprep.subr.mxu0 0.0
        %618 = vmatpush1.msra.mxu0 0.0
        %619 = vmatprep.subr.mxu0 0.0
        %620 = vmatpush1.msra.mxu0 0.0
        %621 = vmatprep.subr.mxu0 0.0
        %622 = vmatpush1.msra.mxu0 0.0
        %623 = vmatprep.subr.mxu0 0.0
        %624 = vmatpush1.msra.mxu0 %v591
        %625 = vmatprep.subr.mxu0 0.0
        %626 = vmatpush2.msra.mxu0 0.0
        %627 = vmatprep.subr.mxu0 0.0
        %628 = vmatpush2.msra.mxu0 0.0
        %629 = vmatprep.subr.mxu0 0.0
        %630 = vmatpush2.msra.mxu0 0.0
        %631 = vmatprep.subr.mxu0 0.0
        %632 = vmatpush2.msra.mxu0 0.0
        %633 = vmatprep.subr.mxu0 0.0
        %634 = vmatpush2.msra.mxu0 0.0
        %635 = vmatprep.subr.mxu0 0.0
        %636 = vmatpush2.msra.mxu0 0.0
        %637 = vmatprep.subr.mxu0 0.0
        %638 = vmatpush2.msra.mxu0 0.0
        %639 = vmatprep.subr.mxu0 0.0
        %640 = vmatpush2.msra.mxu0 0.0
        %641 = vmatprep.subr.mxu0 0.0
        %642 = vmatpush2.msra.mxu0 0.0
        %643 = vmatprep.subr.mxu0 0.0
        %644 = vmatpush2.msra.mxu0 0.0
        %645 = vmatprep.subr.mxu0 0.0
        %646 = vmatpush2.msra.mxu0 0.0
        %647 = vmatprep.subr.mxu0 0.0
        %648 = vmatpush2.msra.mxu0 0.0
        %649 = vmatprep.subr.mxu0 0.0
        %650 = vmatpush2.msra.mxu0 0.0
        %651 = vmatprep.subr.mxu0 0.0
        %652 = vmatpush2.msra.mxu0 0.0
        %653 = vmatprep.subr.mxu0 0.0
        %654 = vmatpush2.msra.mxu0 0.0
        %655 = vmatprep.subr.mxu0 0.0
        %656 = vmatpush2.msra.mxu0 0.0
        %657 = vmatprep.mubr.f32.mxu0 0.0
        %658 = vmatmul.mubr.f32.gmra.mxu0 %v566
        %v659 = vpop.f32.mrf.mxu0
        %v660 = vadd.f32 %v562, %v659
        %v661 = vpop.f32.mrf.mxu0
        %662 = vmatprep.mubr.f32.mxu0 0.0
        %663 = vmatmul.mubr.f32.gmra.mxu0 %v569
        %v664 = vpop.f32.mrf.mxu0
        %v665 = vadd.f32 %v562, %v664
        %v666 = vpop.f32.mrf.mxu0
        %667 = vmatprep.mubr.f32.mxu0 0.0
        %668 = vmatmul.mubr.f32.gmra.mxu0 %v572
        %v669 = vpop.f32.mrf.mxu0
        %v670 = vadd.f32 %v562, %v669
        %v671 = vpop.f32.mrf.mxu0
        %672 = vmatprep.mubr.f32.mxu0 0.0
        %673 = vmatmul.mubr.f32.gmra.mxu0 %v575
        %v674 = vpop.f32.mrf.mxu0
        %v675 = vadd.f32 %v562, %v674
        %v676 = vpop.f32.mrf.mxu0
        %677 = vmatprep.mubr.f32.mxu0 0.0
        %678 = vmatmul.mubr.f32.gmra.mxu0 %v578
        %v679 = vpop.f32.mrf.mxu0
        %v680 = vadd.f32 %v562, %v679
        %v681 = vpop.f32.mrf.mxu0
        %682 = vmatprep.mubr.f32.mxu0 0.0
        %683 = vmatmul.mubr.f32.gmra.mxu0 %v581
        %v684 = vpop.f32.mrf.mxu0
        %v685 = vadd.f32 %v562, %v684
        %v686 = vpop.f32.mrf.mxu0
        %687 = vmatprep.mubr.f32.mxu0 0.0
        %688 = vmatmul.mubr.f32.gmra.mxu0 %v584
        %v689 = vpop.f32.mrf.mxu0
        %v690 = vadd.f32 %v562, %v689
        %v691 = vpop.f32.mrf.mxu0
        %692 = vmatprep.mubr.f32.mxu0 0.0
        %693 = vmatmul.mubr.f32.gmra.mxu0 %v587
        %v694 = vpop.f32.mrf.mxu0
        %v695 = vadd.f32 %v562, %v694
        %v696 = vpop.f32.mrf.mxu0
        %697 = vdwg.mxu0
        %vm698 = vcmask 130048
        %699 = vst.msk [vmem:[#allocation2] sm:$0xff] %vm698, %v660
        %700 = vst.msk [vmem:[#allocation2 + $0x8] sm:$0xff] %vm698, %v665
        %701 = vst.msk [vmem:[#allocation2 + $0x10] sm:$0xff] %vm698, %v670
        %702 = vst.msk [vmem:[#allocation2 + $0x18] sm:$0xff] %vm698, %v675
        %703 = vst.msk [vmem:[#allocation2 + $0x20] sm:$0xff] %vm698, %v680
        %704 = vst.msk [vmem:[#allocation2 + $0x28] sm:$0xff] %vm698, %v685
        %705 = vst.msk [vmem:[#allocation2 + $0x30] sm:$0xff] %vm698, %v690
        %706 = vst.msk [vmem:[#allocation2 + $0x38] sm:$0xff] %vm698, %v695
        %v707 = vld [vmem:[#allocation2] sm:$0xff]
        %v708 = vld [vmem:[#allocation2 + $0x8] sm:$0xff]
        %v709 = vld [vmem:[#allocation2 + $0x10] sm:$0xff]
        %v710 = vld [vmem:[#allocation2 + $0x18] sm:$0xff]
        %v711 = vld [vmem:[#allocation2 + $0x20] sm:$0xff]
        %v712 = vld [vmem:[#allocation2 + $0x28] sm:$0xff]
        %v713 = vld [vmem:[#allocation2 + $0x30] sm:$0xff]
        %v714 = vld [vmem:[#allocation2 + $0x38] sm:$0xff]
        %722 = vrot.lane.b32.xlu0 %v708, 16
        %v723 = vpop.permute.xlu0 %722
        %724 = vrot.lane.b32.xlu0 %v709, 16
        %v725 = vpop.permute.xlu0 %724
        %726 = vrot.lane.b32.xlu0 %v710, 16
        %v727 = vpop.permute.xlu0 %726
        %728 = vrot.lane.b32.xlu0 %v711, 16
        %v729 = vpop.permute.xlu0 %728
        %730 = vrot.lane.b32.xlu0 %v712, 16
        %v731 = vpop.permute.xlu0 %730
        %732 = vrot.lane.b32.xlu0 %v713, 16
        %v733 = vpop.permute.xlu0 %732
        %734 = vrot.lane.b32.xlu0 %v714, 16
        %v735 = vpop.permute.xlu0 %734
        %v743 = vsel %vm698, %v707, %v723
        %v744 = vsel %vm698, %v708, %v725
        %v745 = vsel %vm698, %v709, %v727
        %v746 = vsel %vm698, %v710, %v729
        %v747 = vsel %vm698, %v711, %v731
        %v748 = vsel %vm698, %v712, %v733
        %v749 = vsel %vm698, %v713, %v735
        %v750 = vld [vmem:[%s3] sm:$0xff]
        %v751 = vld [vmem:[%s3 + $0x8] sm:$0xff]
        %v752 = vld [vmem:[%s3 + $0x10] sm:$0xff]
        %v753 = vld [vmem:[%s3 + $0x18] sm:$0xff]
        %v754 = vld [vmem:[%s4] sm:$0x1]
        %v756 = vlaneseq
        %v757 = vshrl.u32 %v756, 7
        %v758 = vsub.s32 0, %v757
        %v759 = vrot.slane %v754, %v758
        %vm761 = vcmask 261120
        %v763 = vsel %vm761, %v743, 0
        %v766 = vsel %vm761, %v744, 0
        %v769 = vsel %vm761, %v745, 0
        %v772 = vsel %vm761, %v746, 0
        %v775 = vsel %vm761, %v747, 0
        %v778 = vsel %vm761, %v748, 0
        %v781 = vsel %vm761, %v749, 0
        %783 = vmatprep.subr.mxu0 0.0
        %784 = vmatpush1.msra.mxu0 0.0
        %785 = vmatprep.subr.mxu0 0.0
        %786 = vmatpush1.msra.mxu0 0.0
        %787 = vmatprep.subr.mxu0 0.0
        %788 = vmatpush1.msra.mxu0 0.0
        %789 = vmatprep.subr.mxu0 0.0
        %790 = vmatpush1.msra.mxu0 0.0
        %791 = vmatprep.subr.mxu0 0.0
        %792 = vmatpush1.msra.mxu0 0.0
        %793 = vmatprep.subr.mxu0 0.0
        %794 = vmatpush1.msra.mxu0 0.0
        %795 = vmatprep.subr.mxu0 0.0
        %796 = vmatpush1.msra.mxu0 0.0
        %797 = vmatprep.subr.mxu0 0.0
        %798 = vmatpush1.msra.mxu0 0.0
        %799 = vmatprep.subr.mxu0 0.0
        %800 = vmatpush1.msra.mxu0 0.0
        %801 = vmatprep.subr.mxu0 0.0
        %802 = vmatpush1.msra.mxu0 0.0
        %803 = vmatprep.subr.mxu0 0.0
        %804 = vmatpush1.msra.mxu0 0.0
        %805 = vmatprep.subr.mxu0 0.0
        %806 = vmatpush1.msra.mxu0 0.0
        %807 = vmatprep.subr.mxu0 0.0
        %808 = vmatpush1.msra.mxu0 %v753
        %809 = vmatprep.subr.mxu0 0.0
        %810 = vmatpush1.msra.mxu0 %v752
        %811 = vmatprep.subr.mxu0 0.0
        %812 = vmatpush1.msra.mxu0 %v751
        %813 = vmatprep.subr.mxu0 0.0
        %814 = vmatpush1.msra.mxu0 %v750
        %815 = vmatprep.subr.mxu0 0.0
        %816 = vmatpush2.msra.mxu0 0.0
        %817 = vmatprep.subr.mxu0 0.0
        %818 = vmatpush2.msra.mxu0 0.0
        %819 = vmatprep.subr.mxu0 0.0
        %820 = vmatpush2.msra.mxu0 0.0
        %821 = vmatprep.subr.mxu0 0.0
        %822 = vmatpush2.msra.mxu0 0.0
        %823 = vmatprep.subr.mxu0 0.0
        %824 = vmatpush2.msra.mxu0 0.0
        %825 = vmatprep.subr.mxu0 0.0
        %826 = vmatpush2.msra.mxu0 0.0
        %827 = vmatprep.subr.mxu0 0.0
        %828 = vmatpush2.msra.mxu0 0.0
        %829 = vmatprep.subr.mxu0 0.0
        %830 = vmatpush2.msra.mxu0 0.0
        %831 = vmatprep.subr.mxu0 0.0
        %832 = vmatpush2.msra.mxu0 0.0
        %833 = vmatprep.subr.mxu0 0.0
        %834 = vmatpush2.msra.mxu0 0.0
        %835 = vmatprep.subr.mxu0 0.0
        %836 = vmatpush2.msra.mxu0 0.0
        %837 = vmatprep.subr.mxu0 0.0
        %838 = vmatpush2.msra.mxu0 0.0
        %839 = vmatprep.subr.mxu0 0.0
        %840 = vmatpush2.msra.mxu0 0.0
        %841 = vmatprep.subr.mxu0 0.0
        %842 = vmatpush2.msra.mxu0 0.0
        %843 = vmatprep.subr.mxu0 0.0
        %844 = vmatpush2.msra.mxu0 0.0
        %845 = vmatprep.subr.mxu0 0.0
        %846 = vmatpush2.msra.mxu0 0.0
        %847 = vmatprep.mubr.f32.mxu0 0.0
        %848 = vmatmul.mubr.f32.gmra.mxu0 %v763
        %v849 = vpop.f32.mrf.mxu0
        %v850 = vadd.f32 %v759, %v849
        %v851 = vpop.f32.mrf.mxu0
        %852 = vmatprep.mubr.f32.mxu0 0.0
        %853 = vmatmul.mubr.f32.gmra.mxu0 %v766
        %v854 = vpop.f32.mrf.mxu0
        %v855 = vadd.f32 %v759, %v854
        %v856 = vpop.f32.mrf.mxu0
        %857 = vmatprep.mubr.f32.mxu0 0.0
        %858 = vmatmul.mubr.f32.gmra.mxu0 %v769
        %v859 = vpop.f32.mrf.mxu0
        %v860 = vadd.f32 %v759, %v859
        %v861 = vpop.f32.mrf.mxu0
        %862 = vmatprep.mubr.f32.mxu0 0.0
        %863 = vmatmul.mubr.f32.gmra.mxu0 %v772
        %v864 = vpop.f32.mrf.mxu0
        %v865 = vadd.f32 %v759, %v864
        %v866 = vpop.f32.mrf.mxu0
        %867 = vmatprep.mubr.f32.mxu0 0.0
        %868 = vmatmul.mubr.f32.gmra.mxu0 %v775
        %v869 = vpop.f32.mrf.mxu0
        %v870 = vadd.f32 %v759, %v869
        %v871 = vpop.f32.mrf.mxu0
        %872 = vmatprep.mubr.f32.mxu0 0.0
        %873 = vmatmul.mubr.f32.gmra.mxu0 %v778
        %v874 = vpop.f32.mrf.mxu0
        %v875 = vadd.f32 %v759, %v874
        %v876 = vpop.f32.mrf.mxu0
        %877 = vmatprep.mubr.f32.mxu0 0.0
        %878 = vmatmul.mubr.f32.gmra.mxu0 %v781
        %v879 = vpop.f32.mrf.mxu0
        %v880 = vadd.f32 %v759, %v879
        %v881 = vpop.f32.mrf.mxu0
        %882 = vdwg.mxu0
        %v883 = vtanh.pop %v850
        %v884 = vtanh.pop %v855
        %v885 = vtanh.pop %v860
        %v886 = vtanh.pop %v865
        %v887 = vtanh.pop %v870
        %v888 = vtanh.pop %v875
        %v889 = vtanh.pop %v880
        %v890 = vxor.u32 %v850, 2147483648
        %v891 = vxor.u32 %v855, 2147483648
        %v892 = vxor.u32 %v860, 2147483648
        %v893 = vxor.u32 %v865, 2147483648
        %v894 = vxor.u32 %v870, 2147483648
        %v895 = vxor.u32 %v875, 2147483648
        %v896 = vxor.u32 %v880, 2147483648
        %v897 = vmul.f32 %v890, 1.442695
        %v898 = vpow.pop %v897
        %v899 = vmul.f32 %v891, 1.442695
        %v900 = vpow.pop %v899
        %v901 = vmul.f32 %v892, 1.442695
        %v902 = vpow.pop %v901
        %v903 = vmul.f32 %v893, 1.442695
        %v904 = vpow.pop %v903
        %v905 = vmul.f32 %v894, 1.442695
        %v906 = vpow.pop %v905
        %v907 = vmul.f32 %v895, 1.442695
        %v908 = vpow.pop %v907
        %v909 = vmul.f32 %v896, 1.442695
        %v910 = vpow.pop %v909
        %v911 = vadd.f32 %v898, 1.0
        %v912 = vadd.f32 %v900, 1.0
        %v913 = vadd.f32 %v902, 1.0
        %v914 = vadd.f32 %v904, 1.0
        %v915 = vadd.f32 %v906, 1.0
        %v916 = vadd.f32 %v908, 1.0
        %v917 = vadd.f32 %v910, 1.0
        %v918 = vrcp.pop %v911
        %v919 = vmul.f32 1.0, %v918
        %v920 = vrcp.pop %v912
        %v921 = vmul.f32 1.0, %v920
        %v922 = vrcp.pop %v913
        %v923 = vmul.f32 1.0, %v922
        %v924 = vrcp.pop %v914
        %v925 = vmul.f32 1.0, %v924
        %v926 = vrcp.pop %v915
        %v927 = vmul.f32 1.0, %v926
        %v928 = vrcp.pop %v916
        %v929 = vmul.f32 1.0, %v928
        %v930 = vrcp.pop %v917
        %v931 = vmul.f32 1.0, %v930
        %939 = vrot.lane.b32.xlu0 %v919, 112
        %v940 = vpop.permute.xlu0 %939
        %941 = vrot.lane.b32.xlu0 %v921, 112
        %v942 = vpop.permute.xlu0 %941
        %943 = vrot.lane.b32.xlu0 %v923, 112
        %v944 = vpop.permute.xlu0 %943
        %945 = vrot.lane.b32.xlu0 %v925, 112
        %v946 = vpop.permute.xlu0 %945
        %947 = vrot.lane.b32.xlu0 %v927, 112
        %v948 = vpop.permute.xlu0 %947
        %949 = vrot.lane.b32.xlu0 %v929, 112
        %v950 = vpop.permute.xlu0 %949
        %951 = vrot.lane.b32.xlu0 %v931, 112
        %v952 = vpop.permute.xlu0 %951
        %v960 = vmul.f32 %v883, %v940
        %v961 = vmul.f32 %v884, %v942
        %v962 = vmul.f32 %v885, %v944
        %v963 = vmul.f32 %v886, %v946
        %v964 = vmul.f32 %v887, %v948
        %v965 = vmul.f32 %v888, %v950
        %v966 = vmul.f32 %v889, %v952
        %v967 = vld [vmem:[%s7] sm:$0xff]
        %v968 = vld [vmem:[%s7 + $0x8] sm:$0xff]
        %v969 = vld [vmem:[%s8] sm:$0x1]
        %v971 = vlaneseq
        %v972 = vshrl.u32 %v971, 7
        %v973 = vsub.s32 0, %v972
        %v974 = vrot.slane %v969, %v973
        %v977 = vsel %vm698, %v960, 0
        %v980 = vsel %vm698, %v961, 0
        %v983 = vsel %vm698, %v962, 0
        %v986 = vsel %vm698, %v963, 0
        %v989 = vsel %vm698, %v964, 0
        %v992 = vsel %vm698, %v965, 0
        %v995 = vsel %vm698, %v966, 0
        %997 = vmatprep.subr.mxu0 0.0
        %998 = vmatpush1.msra.mxu0 0.0
        %999 = vmatprep.subr.mxu0 0.0
        %1000 = vmatpush1.msra.mxu0 0.0
        %1001 = vmatprep.subr.mxu0 0.0
        %1002 = vmatpush1.msra.mxu0 0.0
        %1003 = vmatprep.subr.mxu0 0.0
        %1004 = vmatpush1.msra.mxu0 0.0
        %1005 = vmatprep.subr.mxu0 0.0
        %1006 = vmatpush1.msra.mxu0 0.0
        %1007 = vmatprep.subr.mxu0 0.0
        %1008 = vmatpush1.msra.mxu0 0.0
        %1009 = vmatprep.subr.mxu0 0.0
        %1010 = vmatpush1.msra.mxu0 0.0
        %1011 = vmatprep.subr.mxu0 0.0
        %1012 = vmatpush1.msra.mxu0 0.0
        %1013 = vmatprep.subr.mxu0 0.0
        %1014 = vmatpush1.msra.mxu0 0.0
        %1015 = vmatprep.subr.mxu0 0.0
        %1016 = vmatpush1.msra.mxu0 0.0
        %1017 = vmatprep.subr.mxu0 0.0
        %1018 = vmatpush1.msra.mxu0 0.0
        %1019 = vmatprep.subr.mxu0 0.0
        %1020 = vmatpush1.msra.mxu0 0.0
        %1021 = vmatprep.subr.mxu0 0.0
        %1022 = vmatpush1.msra.mxu0 0.0
        %1023 = vmatprep.subr.mxu0 0.0
        %1024 = vmatpush1.msra.mxu0 0.0
        %1025 = vmatprep.subr.mxu0 0.0
        %1026 = vmatpush1.msra.mxu0 %v968
        %1027 = vmatprep.subr.mxu0 0.0
        %1028 = vmatpush1.msra.mxu0 %v967
        %1029 = vmatprep.subr.mxu0 0.0
        %1030 = vmatpush2.msra.mxu0 0.0
        %1031 = vmatprep.subr.mxu0 0.0
        %1032 = vmatpush2.msra.mxu0 0.0
        %1033 = vmatprep.subr.mxu0 0.0
        %1034 = vmatpush2.msra.mxu0 0.0
        %1035 = vmatprep.subr.mxu0 0.0
        %1036 = vmatpush2.msra.mxu0 0.0
        %1037 = vmatprep.subr.mxu0 0.0
        %1038 = vmatpush2.msra.mxu0 0.0
        %1039 = vmatprep.subr.mxu0 0.0
        %1040 = vmatpush2.msra.mxu0 0.0
        %1041 = vmatprep.subr.mxu0 0.0
        %1042 = vmatpush2.msra.mxu0 0.0
        %1043 = vmatprep.subr.mxu0 0.0
        %1044 = vmatpush2.msra.mxu0 0.0
        %1045 = vmatprep.subr.mxu0 0.0
        %1046 = vmatpush2.msra.mxu0 0.0
        %1047 = vmatprep.subr.mxu0 0.0
        %1048 = vmatpush2.msra.mxu0 0.0
        %1049 = vmatprep.subr.mxu0 0.0
        %1050 = vmatpush2.msra.mxu0 0.0
        %1051 = vmatprep.subr.mxu0 0.0
        %1052 = vmatpush2.msra.mxu0 0.0
        %1053 = vmatprep.subr.mxu0 0.0
        %1054 = vmatpush2.msra.mxu0 0.0
        %1055 = vmatprep.subr.mxu0 0.0
        %1056 = vmatpush2.msra.mxu0 0.0
        %1057 = vmatprep.subr.mxu0 0.0
        %1058 = vmatpush2.msra.mxu0 0.0
        %1059 = vmatprep.subr.mxu0 0.0
        %1060 = vmatpush2.msra.mxu0 0.0
        %1061 = vmatprep.mubr.f32.mxu0 0.0
        %1062 = vmatmul.mubr.f32.gmra.mxu0 %v977
        %v1063 = vpop.f32.mrf.mxu0
        %v1064 = vadd.f32 %v974, %v1063
        %v1065 = vpop.f32.mrf.mxu0
        %1066 = vmatprep.mubr.f32.mxu0 0.0
        %1067 = vmatmul.mubr.f32.gmra.mxu0 %v980
        %v1068 = vpop.f32.mrf.mxu0
        %v1069 = vadd.f32 %v974, %v1068
        %v1070 = vpop.f32.mrf.mxu0
        %1071 = vmatprep.mubr.f32.mxu0 0.0
        %1072 = vmatmul.mubr.f32.gmra.mxu0 %v983
        %v1073 = vpop.f32.mrf.mxu0
        %v1074 = vadd.f32 %v974, %v1073
        %v1075 = vpop.f32.mrf.mxu0
        %1076 = vmatprep.mubr.f32.mxu0 0.0
        %1077 = vmatmul.mubr.f32.gmra.mxu0 %v986
        %v1078 = vpop.f32.mrf.mxu0
        %v1079 = vadd.f32 %v974, %v1078
        %v1080 = vpop.f32.mrf.mxu0
        %1081 = vmatprep.mubr.f32.mxu0 0.0
        %1082 = vmatmul.mubr.f32.gmra.mxu0 %v989
        %v1083 = vpop.f32.mrf.mxu0
        %v1084 = vadd.f32 %v974, %v1083
        %v1085 = vpop.f32.mrf.mxu0
        %1086 = vmatprep.mubr.f32.mxu0 0.0
        %1087 = vmatmul.mubr.f32.gmra.mxu0 %v992
        %v1088 = vpop.f32.mrf.mxu0
        %v1089 = vadd.f32 %v974, %v1088
        %v1090 = vpop.f32.mrf.mxu0
        %1091 = vmatprep.mubr.f32.mxu0 0.0
        %1092 = vmatmul.mubr.f32.gmra.mxu0 %v995
        %v1093 = vpop.f32.mrf.mxu0
        %v1094 = vadd.f32 %v974, %v1093
        %v1095 = vpop.f32.mrf.mxu0
        %1096 = vdwg.mxu0
        %v1097 = vadd.f32 %v1064, %v708
        %v1098 = vadd.f32 %v1069, %v709
        %v1099 = vadd.f32 %v1074, %v710
        %v1100 = vadd.f32 %v1079, %v711
        %v1101 = vadd.f32 %v1084, %v712
        %v1102 = vadd.f32 %v1089, %v713
        %v1103 = vadd.f32 %v1094, %v714
        %1104 = vst.msk [vmem:[#allocation2 + $0x8] sm:$0xff] %vm698, %v1097
        %1105 = vst.msk [vmem:[#allocation2 + $0x10] sm:$0xff] %vm698, %v1098
        %1106 = vst.msk [vmem:[#allocation2 + $0x18] sm:$0xff] %vm698, %v1099
        %1107 = vst.msk [vmem:[#allocation2 + $0x20] sm:$0xff] %vm698, %v1100
        %1108 = vst.msk [vmem:[#allocation2 + $0x28] sm:$0xff] %vm698, %v1101
        %1109 = vst.msk [vmem:[#allocation2 + $0x30] sm:$0xff] %vm698, %v1102
        %1110 = vst.msk [vmem:[#allocation2 + $0x38] sm:$0xff] %vm698, %v1103
        %v1111 = vld [vmem:[#allocation2 + $0x8] sm:$0xff]
        %v1112 = vld [vmem:[#allocation2 + $0x10] sm:$0xff]
        %v1113 = vld [vmem:[#allocation2 + $0x18] sm:$0xff]
        %v1114 = vld [vmem:[#allocation2 + $0x20] sm:$0xff]
        %v1115 = vld [vmem:[#allocation2 + $0x28] sm:$0xff]
        %v1116 = vld [vmem:[#allocation2 + $0x30] sm:$0xff]
        %v1117 = vld [vmem:[#allocation2 + $0x38] sm:$0xff]
        %1123 = vrot.lane.b32.xlu0 %v1113, 16
        %v1124 = vpop.permute.xlu0 %1123
        %1125 = vrot.lane.b32.xlu0 %v1114, 16
        %v1126 = vpop.permute.xlu0 %1125
        %1127 = vrot.lane.b32.xlu0 %v1115, 16
        %v1128 = vpop.permute.xlu0 %1127
        %1129 = vrot.lane.b32.xlu0 %v1116, 16
        %v1130 = vpop.permute.xlu0 %1129
        %1131 = vrot.lane.b32.xlu0 %v1117, 16
        %v1132 = vpop.permute.xlu0 %1131
        %v1138 = vsel %vm698, %v1111, %v1124
        %v1139 = vsel %vm698, %v1112, %v1126
        %v1140 = vsel %vm698, %v1113, %v1128
        %v1141 = vsel %vm698, %v1114, %v1130
        %v1142 = vsel %vm698, %v1115, %v1132
        %s1143 = scalar_lea.vmem %s3, 32
        %v1144 = vld [vmem:[%s1143] sm:$0xff]
        %v1145 = vld [vmem:[%s1143 + $0x8] sm:$0xff]
        %v1146 = vld [vmem:[%s1143 + $0x10] sm:$0xff]
        %v1147 = vld [vmem:[%s1143 + $0x18] sm:$0xff]
        %s1148 = scalar_lea.vmem %s4, 1
        %v1149 = vld [vmem:[%s1148] sm:$0x1]
        %v1151 = vlaneseq
        %v1152 = vshrl.u32 %v1151, 7
        %v1153 = vsub.s32 0, %v1152
        %v1154 = vrot.slane %v1149, %v1153
        %v1157 = vsel %vm761, %v1138, 0
        %v1160 = vsel %vm761, %v1139, 0
        %v1163 = vsel %vm761, %v1140, 0
        %v1166 = vsel %vm761, %v1141, 0
        %v1169 = vsel %vm761, %v1142, 0
        %1171 = vmatprep.subr.mxu0 0.0
        %1172 = vmatpush1.msra.mxu0 0.0
        %1173 = vmatprep.subr.mxu0 0.0
        %1174 = vmatpush1.msra.mxu0 0.0
        %1175 = vmatprep.subr.mxu0 0.0
        %1176 = vmatpush1.msra.mxu0 0.0
        %1177 = vmatprep.subr.mxu0 0.0
        %1178 = vmatpush1.msra.mxu0 0.0
        %1179 = vmatprep.subr.mxu0 0.0
        %1180 = vmatpush1.msra.mxu0 0.0
        %1181 = vmatprep.subr.mxu0 0.0
        %1182 = vmatpush1.msra.mxu0 0.0
        %1183 = vmatprep.subr.mxu0 0.0
        %1184 = vmatpush1.msra.mxu0 0.0
        %1185 = vmatprep.subr.mxu0 0.0
        %1186 = vmatpush1.msra.mxu0 0.0
        %1187 = vmatprep.subr.mxu0 0.0
        %1188 = vmatpush1.msra.mxu0 0.0
        %1189 = vmatprep.subr.mxu0 0.0
        %1190 = vmatpush1.msra.mxu0 0.0
        %1191 = vmatprep.subr.mxu0 0.0
        %1192 = vmatpush1.msra.mxu0 0.0
        %1193 = vmatprep.subr.mxu0 0.0
        %1194 = vmatpush1.msra.mxu0 0.0
        %1195 = vmatprep.subr.mxu0 0.0
        %1196 = vmatpush1.msra.mxu0 %v1147
        %1197 = vmatprep.subr.mxu0 0.0
        %1198 = vmatpush1.msra.mxu0 %v1146
        %1199 = vmatprep.subr.mxu0 0.0
        %1200 = vmatpush1.msra.mxu0 %v1145
        %1201 = vmatprep.subr.mxu0 0.0
        %1202 = vmatpush1.msra.mxu0 %v1144
        %1203 = vmatprep.subr.mxu0 0.0
        %1204 = vmatpush2.msra.mxu0 0.0
        %1205 = vmatprep.subr.mxu0 0.0
        %1206 = vmatpush2.msra.mxu0 0.0
        %1207 = vmatprep.subr.mxu0 0.0
        %1208 = vmatpush2.msra.mxu0 0.0
        %1209 = vmatprep.subr.mxu0 0.0
        %1210 = vmatpush2.msra.mxu0 0.0
        %1211 = vmatprep.subr.mxu0 0.0
        %1212 = vmatpush2.msra.mxu0 0.0
        %1213 = vmatprep.subr.mxu0 0.0
        %1214 = vmatpush2.msra.mxu0 0.0
        %1215 = vmatprep.subr.mxu0 0.0
        %1216 = vmatpush2.msra.mxu0 0.0
        %1217 = vmatprep.subr.mxu0 0.0
        %1218 = vmatpush2.msra.mxu0 0.0
        %1219 = vmatprep.subr.mxu0 0.0
        %1220 = vmatpush2.msra.mxu0 0.0
        %1221 = vmatprep.subr.mxu0 0.0
        %1222 = vmatpush2.msra.mxu0 0.0
        %1223 = vmatprep.subr.mxu0 0.0
        %1224 = vmatpush2.msra.mxu0 0.0
        %1225 = vmatprep.subr.mxu0 0.0
        %1226 = vmatpush2.msra.mxu0 0.0
        %1227 = vmatprep.subr.mxu0 0.0
        %1228 = vmatpush2.msra.mxu0 0.0
        %1229 = vmatprep.subr.mxu0 0.0
        %1230 = vmatpush2.msra.mxu0 0.0
        %1231 = vmatprep.subr.mxu0 0.0
        %1232 = vmatpush2.msra.mxu0 0.0
        %1233 = vmatprep.subr.mxu0 0.0
        %1234 = vmatpush2.msra.mxu0 0.0
        %1235 = vmatprep.mubr.f32.mxu0 0.0
        %1236 = vmatmul.mubr.f32.gmra.mxu0 %v1157
        %v1237 = vpop.f32.mrf.mxu0
        %v1238 = vadd.f32 %v1154, %v1237
        %v1239 = vpop.f32.mrf.mxu0
        %1240 = vmatprep.mubr.f32.mxu0 0.0
        %1241 = vmatmul.mubr.f32.gmra.mxu0 %v1160
        %v1242 = vpop.f32.mrf.mxu0
        %v1243 = vadd.f32 %v1154, %v1242
        %v1244 = vpop.f32.mrf.mxu0
        %1245 = vmatprep.mubr.f32.mxu0 0.0
        %1246 = vmatmul.mubr.f32.gmra.mxu0 %v1163
        %v1247 = vpop.f32.mrf.mxu0
        %v1248 = vadd.f32 %v1154, %v1247
        %v1249 = vpop.f32.mrf.mxu0
        %1250 = vmatprep.mubr.f32.mxu0 0.0
        %1251 = vmatmul.mubr.f32.gmra.mxu0 %v1166
        %v1252 = vpop.f32.mrf.mxu0
        %v1253 = vadd.f32 %v1154, %v1252
        %v1254 = vpop.f32.mrf.mxu0
        %1255 = vmatprep.mubr.f32.mxu0 0.0
        %1256 = vmatmul.mubr.f32.gmra.mxu0 %v1169
        %v1257 = vpop.f32.mrf.mxu0
        %v1258 = vadd.f32 %v1154, %v1257
        %v1259 = vpop.f32.mrf.mxu0
        %1260 = vdwg.mxu0
        %v1261 = vtanh.pop %v1238
        %v1262 = vtanh.pop %v1243
        %v1263 = vtanh.pop %v1248
        %v1264 = vtanh.pop %v1253
        %v1265 = vtanh.pop %v1258
        %v1266 = vxor.u32 %v1238, 2147483648
        %v1267 = vxor.u32 %v1243, 2147483648
        %v1268 = vxor.u32 %v1248, 2147483648
        %v1269 = vxor.u32 %v1253, 2147483648
        %v1270 = vxor.u32 %v1258, 2147483648
        %v1271 = vmul.f32 %v1266, 1.442695
        %v1272 = vpow.pop %v1271
        %v1273 = vmul.f32 %v1267, 1.442695
        %v1274 = vpow.pop %v1273
        %v1275 = vmul.f32 %v1268, 1.442695
        %v1276 = vpow.pop %v1275
        %v1277 = vmul.f32 %v1269, 1.442695
        %v1278 = vpow.pop %v1277
        %v1279 = vmul.f32 %v1270, 1.442695
        %v1280 = vpow.pop %v1279
        %v1281 = vadd.f32 %v1272, 1.0
        %v1282 = vadd.f32 %v1274, 1.0
        %v1283 = vadd.f32 %v1276, 1.0
        %v1284 = vadd.f32 %v1278, 1.0
        %v1285 = vadd.f32 %v1280, 1.0
        %v1286 = vrcp.pop %v1281
        %v1287 = vmul.f32 1.0, %v1286
        %v1288 = vrcp.pop %v1282
        %v1289 = vmul.f32 1.0, %v1288
        %v1290 = vrcp.pop %v1283
        %v1291 = vmul.f32 1.0, %v1290
        %v1292 = vrcp.pop %v1284
        %v1293 = vmul.f32 1.0, %v1292
        %v1294 = vrcp.pop %v1285
        %v1295 = vmul.f32 1.0, %v1294
        %1301 = vrot.lane.b32.xlu0 %v1287, 112
        %v1302 = vpop.permute.xlu0 %1301
        %1303 = vrot.lane.b32.xlu0 %v1289, 112
        %v1304 = vpop.permute.xlu0 %1303
        %1305 = vrot.lane.b32.xlu0 %v1291, 112
        %v1306 = vpop.permute.xlu0 %1305
        %1307 = vrot.lane.b32.xlu0 %v1293, 112
        %v1308 = vpop.permute.xlu0 %1307
        %1309 = vrot.lane.b32.xlu0 %v1295, 112
        %v1310 = vpop.permute.xlu0 %1309
        %v1316 = vmul.f32 %v1261, %v1302
        %v1317 = vmul.f32 %v1262, %v1304
        %v1318 = vmul.f32 %v1263, %v1306
        %v1319 = vmul.f32 %v1264, %v1308
        %v1320 = vmul.f32 %v1265, %v1310
        %s1321 = scalar_lea.vmem %s7, 16
        %v1322 = vld [vmem:[%s1321] sm:$0xff]
        %v1323 = vld [vmem:[%s1321 + $0x8] sm:$0xff]
        %s1324 = scalar_lea.vmem %s8, 1
        %v1325 = vld [vmem:[%s1324] sm:$0x1]
        %v1327 = vlaneseq
        %v1328 = vshrl.u32 %v1327, 7
        %v1329 = vsub.s32 0, %v1328
        %v1330 = vrot.slane %v1325, %v1329
        %v1333 = vsel %vm698, %v1316, 0
        %v1336 = vsel %vm698, %v1317, 0
        %v1339 = vsel %vm698, %v1318, 0
        %v1342 = vsel %vm698, %v1319, 0
        %v1345 = vsel %vm698, %v1320, 0
        %1347 = vmatprep.subr.mxu0 0.0
        %1348 = vmatpush1.msra.mxu0 0.0
        %1349 = vmatprep.subr.mxu0 0.0
        %1350 = vmatpush1.msra.mxu0 0.0
        %1351 = vmatprep.subr.mxu0 0.0
        %1352 = vmatpush1.msra.mxu0 0.0
        %1353 = vmatprep.subr.mxu0 0.0
        %1354 = vmatpush1.msra.mxu0 0.0
        %1355 = vmatprep.subr.mxu0 0.0
        %1356 = vmatpush1.msra.mxu0 0.0
        %1357 = vmatprep.subr.mxu0 0.0
        %1358 = vmatpush1.msra.mxu0 0.0
        %1359 = vmatprep.subr.mxu0 0.0
        %1360 = vmatpush1.msra.mxu0 0.0
        %1361 = vmatprep.subr.mxu0 0.0
        %1362 = vmatpush1.msra.mxu0 0.0
        %1363 = vmatprep.subr.mxu0 0.0
        %1364 = vmatpush1.msra.mxu0 0.0
        %1365 = vmatprep.subr.mxu0 0.0
        %1366 = vmatpush1.msra.mxu0 0.0
        %1367 = vmatprep.subr.mxu0 0.0
        %1368 = vmatpush1.msra.mxu0 0.0
        %1369 = vmatprep.subr.mxu0 0.0
        %1370 = vmatpush1.msra.mxu0 0.0
        %1371 = vmatprep.subr.mxu0 0.0
        %1372 = vmatpush1.msra.mxu0 0.0
        %1373 = vmatprep.subr.mxu0 0.0
        %1374 = vmatpush1.msra.mxu0 0.0
        %1375 = vmatprep.subr.mxu0 0.0
        %1376 = vmatpush1.msra.mxu0 %v1323
        %1377 = vmatprep.subr.mxu0 0.0
        %1378 = vmatpush1.msra.mxu0 %v1322
        %1379 = vmatprep.subr.mxu0 0.0
        %1380 = vmatpush2.msra.mxu0 0.0
        %1381 = vmatprep.subr.mxu0 0.0
        %1382 = vmatpush2.msra.mxu0 0.0
        %1383 = vmatprep.subr.mxu0 0.0
        %1384 = vmatpush2.msra.mxu0 0.0
        %1385 = vmatprep.subr.mxu0 0.0
        %1386 = vmatpush2.msra.mxu0 0.0
        %1387 = vmatprep.subr.mxu0 0.0
        %1388 = vmatpush2.msra.mxu0 0.0
        %1389 = vmatprep.subr.mxu0 0.0
        %1390 = vmatpush2.msra.mxu0 0.0
        %1391 = vmatprep.subr.mxu0 0.0
        %1392 = vmatpush2.msra.mxu0 0.0
        %1393 = vmatprep.subr.mxu0 0.0
        %1394 = vmatpush2.msra.mxu0 0.0
        %1395 = vmatprep.subr.mxu0 0.0
        %1396 = vmatpush2.msra.mxu0 0.0
        %1397 = vmatprep.subr.mxu0 0.0
        %1398 = vmatpush2.msra.mxu0 0.0
        %1399 = vmatprep.subr.mxu0 0.0
        %1400 = vmatpush2.msra.mxu0 0.0
        %1401 = vmatprep.subr.mxu0 0.0
        %1402 = vmatpush2.msra.mxu0 0.0
        %1403 = vmatprep.subr.mxu0 0.0
        %1404 = vmatpush2.msra.mxu0 0.0
        %1405 = vmatprep.subr.mxu0 0.0
        %1406 = vmatpush2.msra.mxu0 0.0
        %1407 = vmatprep.subr.mxu0 0.0
        %1408 = vmatpush2.msra.mxu0 0.0
        %1409 = vmatprep.subr.mxu0 0.0
        %1410 = vmatpush2.msra.mxu0 0.0
        %1411 = vmatprep.mubr.f32.mxu0 0.0
        %1412 = vmatmul.mubr.f32.gmra.mxu0 %v1333
        %v1413 = vpop.f32.mrf.mxu0
        %v1414 = vadd.f32 %v1330, %v1413
        %v1415 = vpop.f32.mrf.mxu0
        %1416 = vmatprep.mubr.f32.mxu0 0.0
        %1417 = vmatmul.mubr.f32.gmra.mxu0 %v1336
        %v1418 = vpop.f32.mrf.mxu0
        %v1419 = vadd.f32 %v1330, %v1418
        %v1420 = vpop.f32.mrf.mxu0
        %1421 = vmatprep.mubr.f32.mxu0 0.0
        %1422 = vmatmul.mubr.f32.gmra.mxu0 %v1339
        %v1423 = vpop.f32.mrf.mxu0
        %v1424 = vadd.f32 %v1330, %v1423
        %v1425 = vpop.f32.mrf.mxu0
        %1426 = vmatprep.mubr.f32.mxu0 0.0
        %1427 = vmatmul.mubr.f32.gmra.mxu0 %v1342
        %v1428 = vpop.f32.mrf.mxu0
        %v1429 = vadd.f32 %v1330, %v1428
        %v1430 = vpop.f32.mrf.mxu0
        %1431 = vmatprep.mubr.f32.mxu0 0.0
        %1432 = vmatmul.mubr.f32.gmra.mxu0 %v1345
        %v1433 = vpop.f32.mrf.mxu0
        %v1434 = vadd.f32 %v1330, %v1433
        %v1435 = vpop.f32.mrf.mxu0
        %1436 = vdwg.mxu0
        %v1437 = vadd.f32 %v1414, %v1113
        %v1438 = vadd.f32 %v1419, %v1114
        %v1439 = vadd.f32 %v1424, %v1115
        %v1440 = vadd.f32 %v1429, %v1116
        %v1441 = vadd.f32 %v1434, %v1117
        %1442 = vst.msk [vmem:[#allocation2 + $0x18] sm:$0xff] %vm698, %v1437
        %1443 = vst.msk [vmem:[#allocation2 + $0x20] sm:$0xff] %vm698, %v1438
        %1444 = vst.msk [vmem:[#allocation2 + $0x28] sm:$0xff] %vm698, %v1439
        %1445 = vst.msk [vmem:[#allocation2 + $0x30] sm:$0xff] %vm698, %v1440
        %1446 = vst.msk [vmem:[#allocation2 + $0x38] sm:$0xff] %vm698, %v1441
        %v1447 = vld [vmem:[#allocation2 + $0x18] sm:$0xff]
        %v1448 = vld [vmem:[#allocation2 + $0x20] sm:$0xff]
        %v1449 = vld [vmem:[#allocation2 + $0x28] sm:$0xff]
        %v1450 = vld [vmem:[#allocation2 + $0x30] sm:$0xff]
        %v1451 = vld [vmem:[#allocation2 + $0x38] sm:$0xff]
        %1456 = vrot.lane.b32.xlu0 %v1448, 16
        %v1457 = vpop.permute.xlu0 %1456
        %1458 = vrot.lane.b32.xlu0 %v1449, 16
        %v1459 = vpop.permute.xlu0 %1458
        %1460 = vrot.lane.b32.xlu0 %v1450, 16
        %v1461 = vpop.permute.xlu0 %1460
        %1462 = vrot.lane.b32.xlu0 %v1451, 16
        %v1463 = vpop.permute.xlu0 %1462
        %v1468 = vsel %vm698, %v1447, %v1457
        %v1469 = vsel %vm698, %v1448, %v1459
        %v1470 = vsel %vm698, %v1449, %v1461
        %v1471 = vsel %vm698, %v1450, %v1463
        %s1472 = scalar_lea.vmem %s3, 64
        %v1473 = vld [vmem:[%s1472] sm:$0xff]
        %v1474 = vld [vmem:[%s1472 + $0x8] sm:$0xff]
        %v1475 = vld [vmem:[%s1472 + $0x10] sm:$0xff]
        %v1476 = vld [vmem:[%s1472 + $0x18] sm:$0xff]
        %s1477 = scalar_lea.vmem %s4, 2
        %v1478 = vld [vmem:[%s1477] sm:$0x1]
        %v1480 = vlaneseq
        %v1481 = vshrl.u32 %v1480, 7
        %v1482 = vsub.s32 0, %v1481
        %v1483 = vrot.slane %v1478, %v1482
        %v1486 = vsel %vm761, %v1468, 0
        %v1489 = vsel %vm761, %v1469, 0
        %v1492 = vsel %vm761, %v1470, 0
        %v1495 = vsel %vm761, %v1471, 0
        %1497 = vmatprep.subr.mxu0 0.0
        %1498 = vmatpush1.msra.mxu0 0.0
        %1499 = vmatprep.subr.mxu0 0.0
        %1500 = vmatpush1.msra.mxu0 0.0
        %1501 = vmatprep.subr.mxu0 0.0
        %1502 = vmatpush1.msra.mxu0 0.0
        %1503 = vmatprep.subr.mxu0 0.0
        %1504 = vmatpush1.msra.mxu0 0.0
        %1505 = vmatprep.subr.mxu0 0.0
        %1506 = vmatpush1.msra.mxu0 0.0
        %1507 = vmatprep.subr.mxu0 0.0
        %1508 = vmatpush1.msra.mxu0 0.0
        %1509 = vmatprep.subr.mxu0 0.0
        %1510 = vmatpush1.msra.mxu0 0.0
        %1511 = vmatprep.subr.mxu0 0.0
        %1512 = vmatpush1.msra.mxu0 0.0
        %1513 = vmatprep.subr.mxu0 0.0
        %1514 = vmatpush1.msra.mxu0 0.0
        %1515 = vmatprep.subr.mxu0 0.0
        %1516 = vmatpush1.msra.mxu0 0.0
        %1517 = vmatprep.subr.mxu0 0.0
        %1518 = vmatpush1.msra.mxu0 0.0
        %1519 = vmatprep.subr.mxu0 0.0
        %1520 = vmatpush1.msra.mxu0 0.0
        %1521 = vmatprep.subr.mxu0 0.0
        %1522 = vmatpush1.msra.mxu0 %v1476
        %1523 = vmatprep.subr.mxu0 0.0
        %1524 = vmatpush1.msra.mxu0 %v1475
        %1525 = vmatprep.subr.mxu0 0.0
        %1526 = vmatpush1.msra.mxu0 %v1474
        %1527 = vmatprep.subr.mxu0 0.0
        %1528 = vmatpush1.msra.mxu0 %v1473
        %1529 = vmatprep.subr.mxu0 0.0
        %1530 = vmatpush2.msra.mxu0 0.0
        %1531 = vmatprep.subr.mxu0 0.0
        %1532 = vmatpush2.msra.mxu0 0.0
        %1533 = vmatprep.subr.mxu0 0.0
        %1534 = vmatpush2.msra.mxu0 0.0
        %1535 = vmatprep.subr.mxu0 0.0
        %1536 = vmatpush2.msra.mxu0 0.0
        %1537 = vmatprep.subr.mxu0 0.0
        %1538 = vmatpush2.msra.mxu0 0.0
        %1539 = vmatprep.subr.mxu0 0.0
        %1540 = vmatpush2.msra.mxu0 0.0
        %1541 = vmatprep.subr.mxu0 0.0
        %1542 = vmatpush2.msra.mxu0 0.0
        %1543 = vmatprep.subr.mxu0 0.0
        %1544 = vmatpush2.msra.mxu0 0.0
        %1545 = vmatprep.subr.mxu0 0.0
        %1546 = vmatpush2.msra.mxu0 0.0
        %1547 = vmatprep.subr.mxu0 0.0
        %1548 = vmatpush2.msra.mxu0 0.0
        %1549 = vmatprep.subr.mxu0 0.0
        %1550 = vmatpush2.msra.mxu0 0.0
        %1551 = vmatprep.subr.mxu0 0.0
        %1552 = vmatpush2.msra.mxu0 0.0
        %1553 = vmatprep.subr.mxu0 0.0
        %1554 = vmatpush2.msra.mxu0 0.0
        %1555 = vmatprep.subr.mxu0 0.0
        %1556 = vmatpush2.msra.mxu0 0.0
        %1557 = vmatprep.subr.mxu0 0.0
        %1558 = vmatpush2.msra.mxu0 0.0
        %1559 = vmatprep.subr.mxu0 0.0
        %1560 = vmatpush2.msra.mxu0 0.0
        %1561 = vmatprep.mubr.f32.mxu0 0.0
        %1562 = vmatmul.mubr.f32.gmra.mxu0 %v1486
        %v1563 = vpop.f32.mrf.mxu0
        %v1564 = vadd.f32 %v1483, %v1563
        %v1565 = vpop.f32.mrf.mxu0
        %1566 = vmatprep.mubr.f32.mxu0 0.0
        %1567 = vmatmul.mubr.f32.gmra.mxu0 %v1489
        %v1568 = vpop.f32.mrf.mxu0
        %v1569 = vadd.f32 %v1483, %v1568
        %v1570 = vpop.f32.mrf.mxu0
        %1571 = vmatprep.mubr.f32.mxu0 0.0
        %1572 = vmatmul.mubr.f32.gmra.mxu0 %v1492
        %v1573 = vpop.f32.mrf.mxu0
        %v1574 = vadd.f32 %v1483, %v1573
        %v1575 = vpop.f32.mrf.mxu0
        %1576 = vmatprep.mubr.f32.mxu0 0.0
        %1577 = vmatmul.mubr.f32.gmra.mxu0 %v1495
        %v1578 = vpop.f32.mrf.mxu0
        %v1579 = vadd.f32 %v1483, %v1578
        %v1580 = vpop.f32.mrf.mxu0
        %1581 = vdwg.mxu0
        %v1582 = vtanh.pop %v1564
        %v1583 = vtanh.pop %v1569
        %v1584 = vtanh.pop %v1574
        %v1585 = vtanh.pop %v1579
        %v1586 = vxor.u32 %v1564, 2147483648
        %v1587 = vxor.u32 %v1569, 2147483648
        %v1588 = vxor.u32 %v1574, 2147483648
        %v1589 = vxor.u32 %v1579, 2147483648
        %v1590 = vmul.f32 %v1586, 1.442695
        %v1591 = vpow.pop %v1590
        %v1592 = vmul.f32 %v1587, 1.442695
        %v1593 = vpow.pop %v1592
        %v1594 = vmul.f32 %v1588, 1.442695
        %v1595 = vpow.pop %v1594
        %v1596 = vmul.f32 %v1589, 1.442695
        %v1597 = vpow.pop %v1596
        %v1598 = vadd.f32 %v1591, 1.0
        %v1599 = vadd.f32 %v1593, 1.0
        %v1600 = vadd.f32 %v1595, 1.0
        %v1601 = vadd.f32 %v1597, 1.0
        %v1602 = vrcp.pop %v1598
        %v1603 = vmul.f32 1.0, %v1602
        %v1604 = vrcp.pop %v1599
        %v1605 = vmul.f32 1.0, %v1604
        %v1606 = vrcp.pop %v1600
        %v1607 = vmul.f32 1.0, %v1606
        %v1608 = vrcp.pop %v1601
        %v1609 = vmul.f32 1.0, %v1608
        %1614 = vrot.lane.b32.xlu0 %v1603, 112
        %v1615 = vpop.permute.xlu0 %1614
        %1616 = vrot.lane.b32.xlu0 %v1605, 112
        %v1617 = vpop.permute.xlu0 %1616
        %1618 = vrot.lane.b32.xlu0 %v1607, 112
        %v1619 = vpop.permute.xlu0 %1618
        %1620 = vrot.lane.b32.xlu0 %v1609, 112
        %v1621 = vpop.permute.xlu0 %1620
        %v1626 = vmul.f32 %v1582, %v1615
        %v1627 = vmul.f32 %v1583, %v1617
        %v1628 = vmul.f32 %v1584, %v1619
        %v1629 = vmul.f32 %v1585, %v1621
        %s1630 = scalar_lea.vmem %s7, 32
        %v1631 = vld [vmem:[%s1630] sm:$0xff]
        %v1632 = vld [vmem:[%s1630 + $0x8] sm:$0xff]
        %s1633 = scalar_lea.vmem %s8, 2
        %v1634 = vld [vmem:[%s1633] sm:$0x1]
        %v1636 = vlaneseq
        %v1637 = vshrl.u32 %v1636, 7
        %v1638 = vsub.s32 0, %v1637
        %v1639 = vrot.slane %v1634, %v1638
        %v1642 = vsel %vm698, %v1626, 0
        %v1645 = vsel %vm698, %v1627, 0
        %v1648 = vsel %vm698, %v1628, 0
        %v1651 = vsel %vm698, %v1629, 0
        %1653 = vmatprep.subr.mxu0 0.0
        %1654 = vmatpush1.msra.mxu0 0.0
        %1655 = vmatprep.subr.mxu0 0.0
        %1656 = vmatpush1.msra.mxu0 0.0
        %1657 = vmatprep.subr.mxu0 0.0
        %1658 = vmatpush1.msra.mxu0 0.0
        %1659 = vmatprep.subr.mxu0 0.0
        %1660 = vmatpush1.msra.mxu0 0.0
        %1661 = vmatprep.subr.mxu0 0.0
        %1662 = vmatpush1.msra.mxu0 0.0
        %1663 = vmatprep.subr.mxu0 0.0
        %1664 = vmatpush1.msra.mxu0 0.0
        %1665 = vmatprep.subr.mxu0 0.0
        %1666 = vmatpush1.msra.mxu0 0.0
        %1667 = vmatprep.subr.mxu0 0.0
        %1668 = vmatpush1.msra.mxu0 0.0
        %1669 = vmatprep.subr.mxu0 0.0
        %1670 = vmatpush1.msra.mxu0 0.0
        %1671 = vmatprep.subr.mxu0 0.0
        %1672 = vmatpush1.msra.mxu0 0.0
        %1673 = vmatprep.subr.mxu0 0.0
        %1674 = vmatpush1.msra.mxu0 0.0
        %1675 = vmatprep.subr.mxu0 0.0
        %1676 = vmatpush1.msra.mxu0 0.0
        %1677 = vmatprep.subr.mxu0 0.0
        %1678 = vmatpush1.msra.mxu0 0.0
        %1679 = vmatprep.subr.mxu0 0.0
        %1680 = vmatpush1.msra.mxu0 0.0
        %1681 = vmatprep.subr.mxu0 0.0
        %1682 = vmatpush1.msra.mxu0 %v1632
        %1683 = vmatprep.subr.mxu0 0.0
        %1684 = vmatpush1.msra.mxu0 %v1631
        %1685 = vmatprep.subr.mxu0 0.0
        %1686 = vmatpush2.msra.mxu0 0.0
        %1687 = vmatprep.subr.mxu0 0.0
        %1688 = vmatpush2.msra.mxu0 0.0
        %1689 = vmatprep.subr.mxu0 0.0
        %1690 = vmatpush2.msra.mxu0 0.0
        %1691 = vmatprep.subr.mxu0 0.0
        %1692 = vmatpush2.msra.mxu0 0.0
        %1693 = vmatprep.subr.mxu0 0.0
        %1694 = vmatpush2.msra.mxu0 0.0
        %1695 = vmatprep.subr.mxu0 0.0
        %1696 = vmatpush2.msra.mxu0 0.0
        %1697 = vmatprep.subr.mxu0 0.0
        %1698 = vmatpush2.msra.mxu0 0.0
        %1699 = vmatprep.subr.mxu0 0.0
        %1700 = vmatpush2.msra.mxu0 0.0
        %1701 = vmatprep.subr.mxu0 0.0
        %1702 = vmatpush2.msra.mxu0 0.0
        %1703 = vmatprep.subr.mxu0 0.0
        %1704 = vmatpush2.msra.mxu0 0.0
        %1705 = vmatprep.subr.mxu0 0.0
        %1706 = vmatpush2.msra.mxu0 0.0
        %1707 = vmatprep.subr.mxu0 0.0
        %1708 = vmatpush2.msra.mxu0 0.0
        %1709 = vmatprep.subr.mxu0 0.0
        %1710 = vmatpush2.msra.mxu0 0.0
        %1711 = vmatprep.subr.mxu0 0.0
        %1712 = vmatpush2.msra.mxu0 0.0
        %1713 = vmatprep.subr.mxu0 0.0
        %1714 = vmatpush2.msra.mxu0 0.0
        %1715 = vmatprep.subr.mxu0 0.0
        %1716 = vmatpush2.msra.mxu0 0.0
        %1717 = vmatprep.mubr.f32.mxu0 0.0
        %1718 = vmatmul.mubr.f32.gmra.mxu0 %v1642
        %v1719 = vpop.f32.mrf.mxu0
        %v1720 = vadd.f32 %v1639, %v1719
        %v1721 = vpop.f32.mrf.mxu0
        %1722 = vmatprep.mubr.f32.mxu0 0.0
        %1723 = vmatmul.mubr.f32.gmra.mxu0 %v1645
        %v1724 = vpop.f32.mrf.mxu0
        %v1725 = vadd.f32 %v1639, %v1724
        %v1726 = vpop.f32.mrf.mxu0
        %1727 = vmatprep.mubr.f32.mxu0 0.0
        %1728 = vmatmul.mubr.f32.gmra.mxu0 %v1648
        %v1729 = vpop.f32.mrf.mxu0
        %v1730 = vadd.f32 %v1639, %v1729
        %v1731 = vpop.f32.mrf.mxu0
        %1732 = vmatprep.mubr.f32.mxu0 0.0
        %1733 = vmatmul.mubr.f32.gmra.mxu0 %v1651
        %v1734 = vpop.f32.mrf.mxu0
        %v1735 = vadd.f32 %v1639, %v1734
        %v1736 = vpop.f32.mrf.mxu0
        %1737 = vdwg.mxu0
        %v1738 = vadd.f32 %v1720, %v1448
        %v1739 = vadd.f32 %v1725, %v1449
        %v1740 = vadd.f32 %v1730, %v1450
        %v1741 = vadd.f32 %v1735, %v1451
        %1742 = vst.msk [vmem:[#allocation2 + $0x20] sm:$0xff] %vm698, %v1738
        %1743 = vst.msk [vmem:[#allocation2 + $0x28] sm:$0xff] %vm698, %v1739
        %1744 = vst.msk [vmem:[#allocation2 + $0x30] sm:$0xff] %vm698, %v1740
        %1745 = vst.msk [vmem:[#allocation2 + $0x38] sm:$0xff] %vm698, %v1741
        %v1746 = vld [vmem:[#allocation2 + $0x20] sm:$0xff]
        %v1747 = vld [vmem:[#allocation2 + $0x28] sm:$0xff]
        %v1748 = vld [vmem:[#allocation2 + $0x30] sm:$0xff]
        %v1749 = vld [vmem:[#allocation2 + $0x38] sm:$0xff]
        %1752 = vrot.lane.b32.xlu0 %v1748, 16
        %v1753 = vpop.permute.xlu0 %1752
        %1754 = vrot.lane.b32.xlu0 %v1749, 16
        %v1755 = vpop.permute.xlu0 %1754
        %v1758 = vsel %vm698, %v1746, %v1753
        %v1759 = vsel %vm698, %v1747, %v1755
        %s1760 = scalar_lea.vmem %s3, 96
        %v1761 = vld [vmem:[%s1760] sm:$0xff]
        %v1762 = vld [vmem:[%s1760 + $0x8] sm:$0xff]
        %v1763 = vld [vmem:[%s1760 + $0x10] sm:$0xff]
        %v1764 = vld [vmem:[%s1760 + $0x18] sm:$0xff]
        %s1765 = scalar_lea.vmem %s4, 3
        %v1766 = vld [vmem:[%s1765] sm:$0x1]
        %v1768 = vlaneseq
        %v1769 = vshrl.u32 %v1768, 7
        %v1770 = vsub.s32 0, %v1769
        %v1771 = vrot.slane %v1766, %v1770
        %v1774 = vsel %vm761, %v1758, 0
        %v1777 = vsel %vm761, %v1759, 0
        %1779 = vmatprep.subr.mxu0 0.0
        %1780 = vmatpush1.msra.mxu0 0.0
        %1781 = vmatprep.subr.mxu0 0.0
        %1782 = vmatpush1.msra.mxu0 0.0
        %1783 = vmatprep.subr.mxu0 0.0
        %1784 = vmatpush1.msra.mxu0 0.0
        %1785 = vmatprep.subr.mxu0 0.0
        %1786 = vmatpush1.msra.mxu0 0.0
        %1787 = vmatprep.subr.mxu0 0.0
        %1788 = vmatpush1.msra.mxu0 0.0
        %1789 = vmatprep.subr.mxu0 0.0
        %1790 = vmatpush1.msra.mxu0 0.0
        %1791 = vmatprep.subr.mxu0 0.0
        %1792 = vmatpush1.msra.mxu0 0.0
        %1793 = vmatprep.subr.mxu0 0.0
        %1794 = vmatpush1.msra.mxu0 0.0
        %1795 = vmatprep.subr.mxu0 0.0
        %1796 = vmatpush1.msra.mxu0 0.0
        %1797 = vmatprep.subr.mxu0 0.0
        %1798 = vmatpush1.msra.mxu0 0.0
        %1799 = vmatprep.subr.mxu0 0.0
        %1800 = vmatpush1.msra.mxu0 0.0
        %1801 = vmatprep.subr.mxu0 0.0
        %1802 = vmatpush1.msra.mxu0 0.0
        %1803 = vmatprep.subr.mxu0 0.0
        %1804 = vmatpush1.msra.mxu0 %v1764
        %1805 = vmatprep.subr.mxu0 0.0
        %1806 = vmatpush1.msra.mxu0 %v1763
        %1807 = vmatprep.subr.mxu0 0.0
        %1808 = vmatpush1.msra.mxu0 %v1762
        %1809 = vmatprep.subr.mxu0 0.0
        %1810 = vmatpush1.msra.mxu0 %v1761
        %1811 = vmatprep.subr.mxu0 0.0
        %1812 = vmatpush2.msra.mxu0 0.0
        %1813 = vmatprep.subr.mxu0 0.0
        %1814 = vmatpush2.msra.mxu0 0.0
        %1815 = vmatprep.subr.mxu0 0.0
        %1816 = vmatpush2.msra.mxu0 0.0
        %1817 = vmatprep.subr.mxu0 0.0
        %1818 = vmatpush2.msra.mxu0 0.0
        %1819 = vmatprep.subr.mxu0 0.0
        %1820 = vmatpush2.msra.mxu0 0.0
        %1821 = vmatprep.subr.mxu0 0.0
        %1822 = vmatpush2.msra.mxu0 0.0
        %1823 = vmatprep.subr.mxu0 0.0
        %1824 = vmatpush2.msra.mxu0 0.0
        %1825 = vmatprep.subr.mxu0 0.0
        %1826 = vmatpush2.msra.mxu0 0.0
        %1827 = vmatprep.subr.mxu0 0.0
        %1828 = vmatpush2.msra.mxu0 0.0
        %1829 = vmatprep.subr.mxu0 0.0
        %1830 = vmatpush2.msra.mxu0 0.0
        %1831 = vmatprep.subr.mxu0 0.0
        %1832 = vmatpush2.msra.mxu0 0.0
        %1833 = vmatprep.subr.mxu0 0.0
        %1834 = vmatpush2.msra.mxu0 0.0
        %1835 = vmatprep.subr.mxu0 0.0
        %1836 = vmatpush2.msra.mxu0 0.0
        %1837 = vmatprep.subr.mxu0 0.0
        %1838 = vmatpush2.msra.mxu0 0.0
        %1839 = vmatprep.subr.mxu0 0.0
        %1840 = vmatpush2.msra.mxu0 0.0
        %1841 = vmatprep.subr.mxu0 0.0
        %1842 = vmatpush2.msra.mxu0 0.0
        %1843 = vmatprep.mubr.f32.mxu0 0.0
        %1844 = vmatmul.mubr.f32.gmra.mxu0 %v1774
        %v1845 = vpop.f32.mrf.mxu0
        %v1846 = vpop.f32.mrf.mxu0
        %1847 = vmatprep.mubr.f32.mxu0 0.0
        %1848 = vmatmul.mubr.f32.gmra.mxu0 %v1777
        %v1849 = vpop.f32.mrf.mxu0
        %v1850 = vadd.f32 %v1771, %v1849
        %v1851 = vpop.f32.mrf.mxu0
        %1852 = vdwg.mxu0
        %v1853 = vtanh.pop %v1850
        %v1854 = vxor.u32 %v1850, 2147483648
        %v1855 = vmul.f32 %v1854, 1.442695
        %v1856 = vpow.pop %v1855
        %v1857 = vadd.f32 %v1856, 1.0
        %v1858 = vrcp.pop %v1857
        %v1859 = vmul.f32 1.0, %v1858
        %1861 = vrot.lane.b32.xlu0 %v1859, 112
        %v1862 = vpop.permute.xlu0 %1861
        %v1864 = vmul.f32 %v1853, %v1862
        %1865 = vrot.lane.b32.xlu0 %v1320, 16
        %v1866 = vpop.permute.xlu0 %1865
        %1868 = vrot.lane.b32.xlu0 %v1629, 32
        %v1869 = vpop.permute.xlu0 %1868
        %1872 = vrot.lane.b32.xlu0 %v1864, 48
        %v1873 = vpop.permute.xlu0 %1872
        %v1875 = vsel %vm698, %v966, %v1866
        %v1876 = vsel %vm761, %v1875, %v1869
        %vm1877 = vcmask 392192
        %v1878 = vsel %vm1877, %v1876, %v1873
        %v1879 = vld [vmem:[%s5] sm:$0xff]
        %v1880 = vld [vmem:[%s5 + $0x8] sm:$0xff]
        %v1881 = vld [vmem:[%s5 + $0x10] sm:$0xff]
        %v1882 = vld [vmem:[%s5 + $0x18] sm:$0xff]
        %v1883 = vld [vmem:[%s5 + $0x20] sm:$0xff]
        %v1884 = vld [vmem:[%s5 + $0x28] sm:$0xff]
        %v1885 = vld [vmem:[%s5 + $0x30] sm:$0xff]
        %v1886 = vld [vmem:[%s5 + $0x38] sm:$0xff]
        %v1887 = vld [vmem:[%s6] sm:$0x1]
        %v1889 = vlaneseq
        %v1890 = vshrl.u32 %v1889, 7
        %v1891 = vsub.s32 0, %v1890
        %v1892 = vrot.slane %v1887, %v1891
        %vm1894 = vcmask 523264
        %v1896 = vsel %vm1894, %v1878, 0
        %1898 = vmatprep.subr.mxu0 0.0
        %1899 = vmatpush1.msra.mxu0 0.0
        %1900 = vmatprep.subr.mxu0 0.0
        %1901 = vmatpush1.msra.mxu0 0.0
        %1902 = vmatprep.subr.mxu0 0.0
        %1903 = vmatpush1.msra.mxu0 0.0
        %1904 = vmatprep.subr.mxu0 0.0
        %1905 = vmatpush1.msra.mxu0 0.0
        %1906 = vmatprep.subr.mxu0 0.0
        %1907 = vmatpush1.msra.mxu0 0.0
        %1908 = vmatprep.subr.mxu0 0.0
        %1909 = vmatpush1.msra.mxu0 0.0
        %1910 = vmatprep.subr.mxu0 0.0
        %1911 = vmatpush1.msra.mxu0 0.0
        %1912 = vmatprep.subr.mxu0 0.0
        %1913 = vmatpush1.msra.mxu0 0.0
        %1914 = vmatprep.subr.mxu0 0.0
        %1915 = vmatpush1.msra.mxu0 %v1886
        %1916 = vmatprep.subr.mxu0 0.0
        %1917 = vmatpush1.msra.mxu0 %v1885
        %1918 = vmatprep.subr.mxu0 0.0
        %1919 = vmatpush1.msra.mxu0 %v1884
        %1920 = vmatprep.subr.mxu0 0.0
        %1921 = vmatpush1.msra.mxu0 %v1883
        %1922 = vmatprep.subr.mxu0 0.0
        %1923 = vmatpush1.msra.mxu0 %v1882
        %1924 = vmatprep.subr.mxu0 0.0
        %1925 = vmatpush1.msra.mxu0 %v1881
        %1926 = vmatprep.subr.mxu0 0.0
        %1927 = vmatpush1.msra.mxu0 %v1880
        %1928 = vmatprep.subr.mxu0 0.0
        %1929 = vmatpush1.msra.mxu0 %v1879
        %1930 = vmatprep.subr.mxu0 0.0
        %1931 = vmatpush2.msra.mxu0 0.0
        %1932 = vmatprep.subr.mxu0 0.0
        %1933 = vmatpush2.msra.mxu0 0.0
        %1934 = vmatprep.subr.mxu0 0.0
        %1935 = vmatpush2.msra.mxu0 0.0
        %1936 = vmatprep.subr.mxu0 0.0
        %1937 = vmatpush2.msra.mxu0 0.0
        %1938 = vmatprep.subr.mxu0 0.0
        %1939 = vmatpush2.msra.mxu0 0.0
        %1940 = vmatprep.subr.mxu0 0.0
        %1941 = vmatpush2.msra.mxu0 0.0
        %1942 = vmatprep.subr.mxu0 0.0
        %1943 = vmatpush2.msra.mxu0 0.0
        %1944 = vmatprep.subr.mxu0 0.0
        %1945 = vmatpush2.msra.mxu0 0.0
        %1946 = vmatprep.subr.mxu0 0.0
        %1947 = vmatpush2.msra.mxu0 0.0
        %1948 = vmatprep.subr.mxu0 0.0
        %1949 = vmatpush2.msra.mxu0 0.0
        %1950 = vmatprep.subr.mxu0 0.0
        %1951 = vmatpush2.msra.mxu0 0.0
        %1952 = vmatprep.subr.mxu0 0.0
        %1953 = vmatpush2.msra.mxu0 0.0
        %1954 = vmatprep.subr.mxu0 0.0
        %1955 = vmatpush2.msra.mxu0 0.0
        %1956 = vmatprep.subr.mxu0 0.0
        %1957 = vmatpush2.msra.mxu0 0.0
        %1958 = vmatprep.subr.mxu0 0.0
        %1959 = vmatpush2.msra.mxu0 0.0
        %1960 = vmatprep.subr.mxu0 0.0
        %1961 = vmatpush2.msra.mxu0 0.0
        %1962 = vmatprep.mubr.f32.mxu0 0.0
        %1963 = vmatmul.mubr.f32.gmra.mxu0 %v1896
        %v1964 = vpop.f32.mrf.mxu0
        %v1965 = vadd.f32 %v1892, %v1964
        %v1966 = vpop.f32.mrf.mxu0
        %1967 = vdwg.mxu0
        %v1968 = vmax.f32 %v1965, 0.0
        %v1969 = vld [vmem:[%s9] sm:$0xff]
        %v1970 = vld [vmem:[%s9 + $0x8] sm:$0xff]
        %v1971 = vld [vmem:[%s9 + $0x10] sm:$0xff]
        %v1972 = vld [vmem:[%s9 + $0x18] sm:$0xff]
        %v1973 = vld [vmem:[#allocation3] sm:$0x1]
        %v1975 = vlaneseq
        %v1976 = vshrl.u32 %v1975, 7
        %v1977 = vsub.s32 0, %v1976
        %v1978 = vrot.slane %v1973, %v1977
        %v1981 = vsel %vm761, %v1968, 0
        %1983 = vmatprep.subr.mxu0 0.0
        %1984 = vmatpush1.msra.mxu0 0.0
        %1985 = vmatprep.subr.mxu0 0.0
        %1986 = vmatpush1.msra.mxu0 0.0
        %1987 = vmatprep.subr.mxu0 0.0
        %1988 = vmatpush1.msra.mxu0 0.0
        %1989 = vmatprep.subr.mxu0 0.0
        %1990 = vmatpush1.msra.mxu0 0.0
        %1991 = vmatprep.subr.mxu0 0.0
        %1992 = vmatpush1.msra.mxu0 0.0
        %1993 = vmatprep.subr.mxu0 0.0
        %1994 = vmatpush1.msra.mxu0 0.0
        %1995 = vmatprep.subr.mxu0 0.0
        %1996 = vmatpush1.msra.mxu0 0.0
        %1997 = vmatprep.subr.mxu0 0.0
        %1998 = vmatpush1.msra.mxu0 0.0
        %1999 = vmatprep.subr.mxu0 0.0
        %2000 = vmatpush1.msra.mxu0 0.0
        %2001 = vmatprep.subr.mxu0 0.0
        %2002 = vmatpush1.msra.mxu0 0.0
        %2003 = vmatprep.subr.mxu0 0.0
        %2004 = vmatpush1.msra.mxu0 0.0
        %2005 = vmatprep.subr.mxu0 0.0
        %2006 = vmatpush1.msra.mxu0 0.0
        %2007 = vmatprep.subr.mxu0 0.0
        %2008 = vmatpush1.msra.mxu0 %v1972
        %2009 = vmatprep.subr.mxu0 0.0
        %2010 = vmatpush1.msra.mxu0 %v1971
        %2011 = vmatprep.subr.mxu0 0.0
        %2012 = vmatpush1.msra.mxu0 %v1970
        %2013 = vmatprep.subr.mxu0 0.0
        %2014 = vmatpush1.msra.mxu0 %v1969
        %2015 = vmatprep.subr.mxu0 0.0
        %2016 = vmatpush2.msra.mxu0 0.0
        %2017 = vmatprep.subr.mxu0 0.0
        %2018 = vmatpush2.msra.mxu0 0.0
        %2019 = vmatprep.subr.mxu0 0.0
        %2020 = vmatpush2.msra.mxu0 0.0
        %2021 = vmatprep.subr.mxu0 0.0
        %2022 = vmatpush2.msra.mxu0 0.0
        %2023 = vmatprep.subr.mxu0 0.0
        %2024 = vmatpush2.msra.mxu0 0.0
        %2025 = vmatprep.subr.mxu0 0.0
        %2026 = vmatpush2.msra.mxu0 0.0
        %2027 = vmatprep.subr.mxu0 0.0
        %2028 = vmatpush2.msra.mxu0 0.0
        %2029 = vmatprep.subr.mxu0 0.0
        %2030 = vmatpush2.msra.mxu0 0.0
        %2031 = vmatprep.subr.mxu0 0.0
        %2032 = vmatpush2.msra.mxu0 0.0
        %2033 = vmatprep.subr.mxu0 0.0
        %2034 = vmatpush2.msra.mxu0 0.0
        %2035 = vmatprep.subr.mxu0 0.0
        %2036 = vmatpush2.msra.mxu0 0.0
        %2037 = vmatprep.subr.mxu0 0.0
        %2038 = vmatpush2.msra.mxu0 0.0
        %2039 = vmatprep.subr.mxu0 0.0
        %2040 = vmatpush2.msra.mxu0 0.0
        %2041 = vmatprep.subr.mxu0 0.0
        %2042 = vmatpush2.msra.mxu0 0.0
        %2043 = vmatprep.subr.mxu0 0.0
        %2044 = vmatpush2.msra.mxu0 0.0
        %2045 = vmatprep.subr.mxu0 0.0
        %2046 = vmatpush2.msra.mxu0 0.0
        %2047 = vmatprep.mubr.f32.mxu0 0.0
        %2048 = vmatmul.mubr.f32.gmra.mxu0 %v1981
        %v2049 = vpop.f32.mrf.mxu0
        %v2050 = vadd.f32 %v1978, %v2049
        %v2051 = vpop.f32.mrf.mxu0
        %2052 = vdwg.mxu0
        %v2053 = vmax.f32 %v2050, 0.0
        %v2054 = vld [vmem:[%s11] sm:$0xff]
        %v2055 = vld [vmem:[%s12] sm:$0xf]
        %vm2056 = vcmask 31744
        %v2058 = vsel %vm2056, %v2054, 0
        %vm2060 = vcmask 1043456
        %v2062 = vsel %vm2060, %v2055, 0
        %2064 = vmatprep.subr.mxu0 0.0
        %2065 = vmatpush1.msra.mxu0 0.0
        %2066 = vmatprep.subr.mxu0 0.0
        %2067 = vmatpush1.msra.mxu0 0.0
        %2068 = vmatprep.subr.mxu0 0.0
        %2069 = vmatpush1.msra.mxu0 0.0
        %2070 = vmatprep.subr.mxu0 0.0
        %2071 = vmatpush1.msra.mxu0 0.0
        %2072 = vmatprep.subr.mxu0 0.0
        %2073 = vmatpush1.msra.mxu0 0.0
        %2074 = vmatprep.subr.mxu0 0.0
        %2075 = vmatpush1.msra.mxu0 0.0
        %2076 = vmatprep.subr.mxu0 0.0
        %2077 = vmatpush1.msra.mxu0 0.0
        %2078 = vmatprep.subr.mxu0 0.0
        %2079 = vmatpush1.msra.mxu0 0.0
        %2080 = vmatprep.subr.mxu0 0.0
        %2081 = vmatpush1.msra.mxu0 0.0
        %2082 = vmatprep.subr.mxu0 0.0
        %2083 = vmatpush1.msra.mxu0 0.0
        %2084 = vmatprep.subr.mxu0 0.0
        %2085 = vmatpush1.msra.mxu0 0.0
        %2086 = vmatprep.subr.mxu0 0.0
        %2087 = vmatpush1.msra.mxu0 0.0
        %2088 = vmatprep.subr.mxu0 0.0
        %2089 = vmatpush1.msra.mxu0 0.0
        %2090 = vmatprep.subr.mxu0 0.0
        %2091 = vmatpush1.msra.mxu0 0.0
        %2092 = vmatprep.subr.mxu0 0.0
        %2093 = vmatpush1.msra.mxu0 0.0
        %2094 = vmatprep.subr.mxu0 0.0
        %2095 = vmatpush1.msra.mxu0 %v2062
        %2096 = vmatprep.subr.mxu0 0.0
        %2097 = vmatpush2.msra.mxu0 0.0
        %2098 = vmatprep.subr.mxu0 0.0
        %2099 = vmatpush2.msra.mxu0 0.0
        %2100 = vmatprep.subr.mxu0 0.0
        %2101 = vmatpush2.msra.mxu0 0.0
        %2102 = vmatprep.subr.mxu0 0.0
        %2103 = vmatpush2.msra.mxu0 0.0
        %2104 = vmatprep.subr.mxu0 0.0
        %2105 = vmatpush2.msra.mxu0 0.0
        %2106 = vmatprep.subr.mxu0 0.0
        %2107 = vmatpush2.msra.mxu0 0.0
        %2108 = vmatprep.subr.mxu0 0.0
        %2109 = vmatpush2.msra.mxu0 0.0
        %2110 = vmatprep.subr.mxu0 0.0
        %2111 = vmatpush2.msra.mxu0 0.0
        %2112 = vmatprep.subr.mxu0 0.0
        %2113 = vmatpush2.msra.mxu0 0.0
        %2114 = vmatprep.subr.mxu0 0.0
        %2115 = vmatpush2.msra.mxu0 0.0
        %2116 = vmatprep.subr.mxu0 0.0
        %2117 = vmatpush2.msra.mxu0 0.0
        %2118 = vmatprep.subr.mxu0 0.0
        %2119 = vmatpush2.msra.mxu0 0.0
        %2120 = vmatprep.subr.mxu0 0.0
        %2121 = vmatpush2.msra.mxu0 0.0
        %2122 = vmatprep.subr.mxu0 0.0
        %2123 = vmatpush2.msra.mxu0 0.0
        %2124 = vmatprep.subr.mxu0 0.0
        %2125 = vmatpush2.msra.mxu0 0.0
        %2126 = vmatprep.subr.mxu0 0.0
        %2127 = vmatpush2.msra.mxu0 0.0
        %2128 = vmatprep.mubr.f32.mxu0 0.0
        %2129 = vmatmul.mubr.f32.gmra.mxu0 %v2058
        %v2130 = vpop.f32.mrf.mxu0
        %v2131 = vadd.f32 0.0, %v2130
        %v2132 = vpop.f32.mrf.mxu0
        %2133 = vdwg.mxu0
        %v2134 = vmax.f32 %v2131, 0.0
        %vm2135 = vcmask 64512
        %v2136 = vsel %vm2135, %v2134, -inf
        %2137 = vmax.xlane.f32.xlu0 %v2136
        %v2138 = vpop.xlane.xlu0 %2137
        %v2139 = vsub.f32 %v2134, %v2138
        %v2140 = vmul.f32 %v2139, 1.442695
        %v2141 = vpow.pop %v2140
        %v2142 = vsel %vm2135, %v2141, 0.0
        %2143 = vadd.xlane.f32.xlu0 %v2142
        %v2144 = vpop.xlane.xlu0 %2143
        %v2145 = vrcp.pop %v2144
        %v2146 = vmul.f32 %v2141, %v2145
        %v2147 = vld [vmem:[%s14] sm:$0xff]
        %v2148 = vld [vmem:[%s14 + $0x8] sm:$0xff]
        %v2149 = vld [vmem:[%s14 + $0x10] sm:$0xff]
        %v2150 = vld [vmem:[%s14 + $0x18] sm:$0xff]
        %v2152 = vsel %vm761, %v2053, 0
        %2154 = vmatprep.subr.mxu0 0.0
        %2155 = vmatpush1.msra.mxu0 0.0
        %2156 = vmatprep.subr.mxu0 0.0
        %2157 = vmatpush1.msra.mxu0 0.0
        %2158 = vmatprep.subr.mxu0 0.0
        %2159 = vmatpush1.msra.mxu0 0.0
        %2160 = vmatprep.subr.mxu0 0.0
        %2161 = vmatpush1.msra.mxu0 0.0
        %2162 = vmatprep.subr.mxu0 0.0
        %2163 = vmatpush1.msra.mxu0 0.0
        %2164 = vmatprep.subr.mxu0 0.0
        %2165 = vmatpush1.msra.mxu0 0.0
        %2166 = vmatprep.subr.mxu0 0.0
        %2167 = vmatpush1.msra.mxu0 0.0
        %2168 = vmatprep.subr.mxu0 0.0
        %2169 = vmatpush1.msra.mxu0 0.0
        %2170 = vmatprep.subr.mxu0 0.0
        %2171 = vmatpush1.msra.mxu0 0.0
        %2172 = vmatprep.subr.mxu0 0.0
        %2173 = vmatpush1.msra.mxu0 0.0
        %2174 = vmatprep.subr.mxu0 0.0
        %2175 = vmatpush1.msra.mxu0 0.0
        %2176 = vmatprep.subr.mxu0 0.0
        %2177 = vmatpush1.msra.mxu0 0.0
        %2178 = vmatprep.subr.mxu0 0.0
        %2179 = vmatpush1.msra.mxu0 %v2150
        %2180 = vmatprep.subr.mxu0 0.0
        %2181 = vmatpush1.msra.mxu0 %v2149
        %2182 = vmatprep.subr.mxu0 0.0
        %2183 = vmatpush1.msra.mxu0 %v2148
        %2184 = vmatprep.subr.mxu0 0.0
        %2185 = vmatpush1.msra.mxu0 %v2147
        %2186 = vmatprep.subr.mxu0 0.0
        %2187 = vmatpush2.msra.mxu0 0.0
        %2188 = vmatprep.subr.mxu0 0.0
        %2189 = vmatpush2.msra.mxu0 0.0
        %2190 = vmatprep.subr.mxu0 0.0
        %2191 = vmatpush2.msra.mxu0 0.0
        %2192 = vmatprep.subr.mxu0 0.0
        %2193 = vmatpush2.msra.mxu0 0.0
        %2194 = vmatprep.subr.mxu0 0.0
        %2195 = vmatpush2.msra.mxu0 0.0
        %2196 = vmatprep.subr.mxu0 0.0
        %2197 = vmatpush2.msra.mxu0 0.0
        %2198 = vmatprep.subr.mxu0 0.0
        %2199 = vmatpush2.msra.mxu0 0.0
        %2200 = vmatprep.subr.mxu0 0.0
        %2201 = vmatpush2.msra.mxu0 0.0
        %2202 = vmatprep.subr.mxu0 0.0
        %2203 = vmatpush2.msra.mxu0 0.0
        %2204 = vmatprep.subr.mxu0 0.0
        %2205 = vmatpush2.msra.mxu0 0.0
        %2206 = vmatprep.subr.mxu0 0.0
        %2207 = vmatpush2.msra.mxu0 0.0
        %2208 = vmatprep.subr.mxu0 0.0
        %2209 = vmatpush2.msra.mxu0 0.0
        %2210 = vmatprep.subr.mxu0 0.0
        %2211 = vmatpush2.msra.mxu0 0.0
        %2212 = vmatprep.subr.mxu0 0.0
        %2213 = vmatpush2.msra.mxu0 0.0
        %2214 = vmatprep.subr.mxu0 0.0
        %2215 = vmatpush2.msra.mxu0 0.0
        %2216 = vmatprep.subr.mxu0 0.0
        %2217 = vmatpush2.msra.mxu0 0.0
        %2218 = vmatprep.mubr.f32.mxu0 0.0
        %2219 = vmatmul.mubr.f32.gmra.mxu0 %v2152
        %v2220 = vpop.f32.mrf.mxu0
        %v2221 = vadd.f32 0.0, %v2220
        %v2222 = vpop.f32.mrf.mxu0
        %2223 = vdwg.mxu0
        %2225 = vrot.lane.b32.xlu0 %v2221, 124
        %v2226 = vpop.permute.xlu0 %2225
        %v2228 = vld [vmem:[%s13] sm:$0xff]
        %2230 = vrot.lane.b32.xlu0 %v2146, 8
        %v2231 = vpop.permute.xlu0 %2230
        %v2233 = vsel %vm2135, %v2228, %v2231
        %v2234 = vld [vmem:[#allocation5] sm:$0x1]
        %v2236 = vlaneseq
        %v2237 = vshrl.u32 %v2236, 7
        %v2238 = vsub.s32 0, %v2237
        %v2239 = vrot.slane %v2234, %v2238
        %v2242 = vsel %vm698, %v2233, 0
        %2244 = vmatprep.subr.mxu0 0.0
        %2245 = vmatpush1.msra.mxu0 0.0
        %2246 = vmatprep.subr.mxu0 0.0
        %2247 = vmatpush1.msra.mxu0 0.0
        %2248 = vmatprep.subr.mxu0 0.0
        %2249 = vmatpush1.msra.mxu0 0.0
        %2250 = vmatprep.subr.mxu0 0.0
        %2251 = vmatpush1.msra.mxu0 0.0
        %2252 = vmatprep.subr.mxu0 0.0
        %2253 = vmatpush1.msra.mxu0 0.0
        %2254 = vmatprep.subr.mxu0 0.0
        %2255 = vmatpush1.msra.mxu0 0.0
        %2256 = vmatprep.subr.mxu0 0.0
        %2257 = vmatpush1.msra.mxu0 0.0
        %2258 = vmatprep.subr.mxu0 0.0
        %2259 = vmatpush1.msra.mxu0 0.0
        %2260 = vmatprep.subr.mxu0 0.0
        %2261 = vmatpush1.msra.mxu0 0.0
        %2262 = vmatprep.subr.mxu0 0.0
        %2263 = vmatpush1.msra.mxu0 0.0
        %2264 = vmatprep.subr.mxu0 0.0
        %2265 = vmatpush1.msra.mxu0 0.0
        %2266 = vmatprep.subr.mxu0 0.0
        %2267 = vmatpush1.msra.mxu0 0.0
        %2268 = vmatprep.subr.mxu0 0.0
        %2269 = vmatpush1.msra.mxu0 0.0
        %2270 = vmatprep.subr.mxu0 0.0
        %2271 = vmatpush1.msra.mxu0 0.0
        %2272 = vmatprep.subr.mxu0 0.0
        %2273 = vmatpush1.msra.mxu0 %v2226
        %2274 = vmatprep.subr.mxu0 0.0
        %2275 = vmatpush1.msra.mxu0 %v2221
        %2276 = vmatprep.subr.mxu0 0.0
        %2277 = vmatpush2.msra.mxu0 0.0
        %2278 = vmatprep.subr.mxu0 0.0
        %2279 = vmatpush2.msra.mxu0 0.0
        %2280 = vmatprep.subr.mxu0 0.0
        %2281 = vmatpush2.msra.mxu0 0.0
        %2282 = vmatprep.subr.mxu0 0.0
        %2283 = vmatpush2.msra.mxu0 0.0
        %2284 = vmatprep.subr.mxu0 0.0
        %2285 = vmatpush2.msra.mxu0 0.0
        %2286 = vmatprep.subr.mxu0 0.0
        %2287 = vmatpush2.msra.mxu0 0.0
        %2288 = vmatprep.subr.mxu0 0.0
        %2289 = vmatpush2.msra.mxu0 0.0
        %2290 = vmatprep.subr.mxu0 0.0
        %2291 = vmatpush2.msra.mxu0 0.0
        %2292 = vmatprep.subr.mxu0 0.0
        %2293 = vmatpush2.msra.mxu0 0.0
        %2294 = vmatprep.subr.mxu0 0.0
        %2295 = vmatpush2.msra.mxu0 0.0
        %2296 = vmatprep.subr.mxu0 0.0
        %2297 = vmatpush2.msra.mxu0 0.0
        %2298 = vmatprep.subr.mxu0 0.0
        %2299 = vmatpush2.msra.mxu0 0.0
        %2300 = vmatprep.subr.mxu0 0.0
        %2301 = vmatpush2.msra.mxu0 0.0
        %2302 = vmatprep.subr.mxu0 0.0
        %2303 = vmatpush2.msra.mxu0 0.0
        %2304 = vmatprep.subr.mxu0 0.0
        %2305 = vmatpush2.msra.mxu0 0.0
        %2306 = vmatprep.subr.mxu0 0.0
        %2307 = vmatpush2.msra.mxu0 0.0
        %2308 = vmatprep.mubr.f32.mxu0 0.0
        %2309 = vmatmul.mubr.f32.gmra.mxu0 %v2242
        %v2310 = vpop.f32.mrf.mxu0
        %v2311 = vadd.f32 %v2239, %v2310
        %v2312 = vpop.f32.mrf.mxu0
        %2313 = vdwg.mxu0
        %2314 = vst.msk [vmem:[%s547] sm:$0xff] %vm2056, %v2311
        %p2315 = scmp.lt.s32.totalorder %s29, 1
        %s2316 = scalar_select %p2315, %s29, 1
        %s2317 = smul.addr %s2316, 8
        %s2318 = scalar_lea.vmem %s16, %s2317
        // Predicated region
        $region93: #{_lambda_.1} parent=83 // pred_check
          %p2319 = pneg %p388
        $region94: #{_lambda_.1} parent=83 // pred_check_branch
          %2321 = sbr.rel (%p2319) target = $region96
        $region95: #{_lambda_.1} parent=83 // pred_region
          _
        $region96: #{_lambda_.1} parent=83 // pred_fallthru
          _
      $region84: #{_lambda_.1} parent=5 // pred_fallthru
        _
      %p2322 = scmp.le.s32.totalorder 2, %s24
      // Predicated region
      $region97: #{_lambda_.1} parent=5 // pred_check
        %p2323 = pneg %p2322
      $region98: #{_lambda_.1} parent=5 // pred_check_branch
        %2325 = sbr.rel (%p2323) target = $region100
      $region99: #{_lambda_.1} parent=5 // pred_region
        %s2326 = ssub.s32 %s24, 2
        // Predicated region
        $region101: #{_lambda_.1} parent=99 // pred_check
          %p2327 = pneg %p394
        $region102: #{_lambda_.1} parent=99 // pred_check_branch
          %2329 = sbr.rel (%p2327) target = $region104
        $region103: #{_lambda_.1} parent=99 // pred_region
          %p2330 = scmp.lt.s32.totalorder %s30, 1
          %s2331 = scalar_select %p2330, %s30, 1
          %s2332 = smul.addr %s2331, 8
          %s2333 = scalar_lea.vmem %s16, %s2332
        $region104: #{_lambda_.1} parent=99 // pred_fallthru
          _
      $region100: #{_lambda_.1} parent=5 // pred_fallthru
        _
    $region6: #{_lambda_.1} parent=1 // loop_footer
      %s28 = sadd.s32 1, %s24
    $region7: #{_lambda_.1} parent=1 // loop_footer_branch
      %23 = sbr.rel target = $region3
    $region8: #{_lambda_.1} parent=1 // loop_exit
      _
    %2334 = vsyncpa [#allocation4], 1
    %s2335 = scalar_lea.sflag [#allocation4], 1
    %2336 = vsyncpa %s2335, 1
    %2337 = vsyncpa [#allocation6], 1

</llo_original>
